<compile_context>
chip_gen: v7x
topology: tpu7x:2x2x1
jax: 0.10.0
libtpu: 0.0.40
codegen_flags: <defaults>
</compile_context>

<pallas_src>
import functools
import math

import jax
import jax.numpy as jnp
import numpy as np
from jax.experimental import pallas as pl
from jax.experimental.pallas import tpu as pltpu


# ----------------------------------------------------------------------------
# In-kernel helpers
# ----------------------------------------------------------------------------
def _attention_merge(qp, kp, vp, m, wm, bm, *, head, hs, scale):
    """Per-head attention + merge projection.

    qp: (nq, D) projected queries; kp/vp: (nk, D) projected keys/values.
    m : (1, nk) float mask (1.0 == masked) or None.
    wm: (D, D) merge weight; bm: (1, D) merge bias.
    """
    outs = []
    for h in range(head):                       # static loop, head is small
        lo = h * hs
        qh = qp[:, lo:lo + hs]
        kh = kp[:, lo:lo + hs]
        vh = vp[:, lo:lo + hs]
        s = jax.lax.dot_general(qh, kh, (((1,), (1,)), ((), ())),
                                preferred_element_type=jnp.float32) * scale
        if m is not None:
            # exact masked_fill semantics (set, not add)
            s = jnp.where(m > 0.5, jnp.float32(-65504.0), s)
        s = s - jnp.max(s, axis=-1, keepdims=True)
        p = jnp.exp(s)
        # reciprocal routed to the EUP slot instead of a VALU divide sequence
        p = p * pl.reciprocal(jnp.sum(p, axis=-1, keepdims=True), approx=True)
        outs.append(jnp.dot(p, vh, preferred_element_type=jnp.float32))
    att = jnp.concatenate(outs, axis=-1)        # (nq, D), lane-dense
    return jnp.dot(att, wm, preferred_element_type=jnp.float32) + bm


# --- self-attention path: one fused (n, D) @ (D, 3D) projection -------------
def _mhatt_self_kernel(x_ref, m_ref, wqkv_ref, bqkv_ref, wm_ref, bm_ref, o_ref,
                       *, head, hs, hidden, scale):
    x = x_ref[0]                                                      # (n, D)
    qkv = (jnp.dot(x, wqkv_ref[...], preferred_element_type=jnp.float32)
           + bqkv_ref[...])                                           # (n, 3D)
    qp = qkv[:, 0:hidden]
    kp = qkv[:, hidden:2 * hidden]
    vp = qkv[:, 2 * hidden:3 * hidden]
    o_ref[0] = _attention_merge(qp, kp, vp, m_ref[0], wm_ref[...], bm_ref[...],
                                head=head, hs=hs, scale=scale)


def _mhatt_self_kernel_nomask(x_ref, wqkv_ref, bqkv_ref, wm_ref, bm_ref, o_ref,
                              *, head, hs, hidden, scale):
    x = x_ref[0]
    qkv = (jnp.dot(x, wqkv_ref[...], preferred_element_type=jnp.float32)
           + bqkv_ref[...])
    qp = qkv[:, 0:hidden]
    kp = qkv[:, hidden:2 * hidden]
    vp = qkv[:, 2 * hidden:3 * hidden]
    o_ref[0] = _attention_merge(qp, kp, vp, None, wm_ref[...], bm_ref[...],
                                head=head, hs=hs, scale=scale)


# --- general (cross-attention) path: q, k, v may be different tensors -------
def _mhatt_cross_kernel(q_ref, k_ref, v_ref, m_ref,
                        wq_ref, bq_ref, wk_ref, bk_ref, wv_ref, bv_ref,
                        wm_ref, bm_ref, o_ref, *, head, hs, scale):
    qp = jnp.dot(q_ref[0], wq_ref[...], preferred_element_type=jnp.float32) + bq_ref[...]
    kp = jnp.dot(k_ref[0], wk_ref[...], preferred_element_type=jnp.float32) + bk_ref[...]
    vp = jnp.dot(v_ref[0], wv_ref[...], preferred_element_type=jnp.float32) + bv_ref[...]
    o_ref[0] = _attention_merge(qp, kp, vp, m_ref[0], wm_ref[...], bm_ref[...],
                                head=head, hs=hs, scale=scale)


def _mhatt_cross_kernel_nomask(q_ref, k_ref, v_ref,
                               wq_ref, bq_ref, wk_ref, bk_ref, wv_ref, bv_ref,
                               wm_ref, bm_ref, o_ref, *, head, hs, scale):
    qp = jnp.dot(q_ref[0], wq_ref[...], preferred_element_type=jnp.float32) + bq_ref[...]
    kp = jnp.dot(k_ref[0], wk_ref[...], preferred_element_type=jnp.float32) + bk_ref[...]
    vp = jnp.dot(v_ref[0], wv_ref[...], preferred_element_type=jnp.float32) + bv_ref[...]
    o_ref[0] = _attention_merge(qp, kp, vp, None, wm_ref[...], bm_ref[...],
                                head=head, hs=hs, scale=scale)


# ----------------------------------------------------------------------------
# Host-side wrapper (single pallas_call per forward)
# ----------------------------------------------------------------------------
_COMPILER_PARAMS = pltpu.CompilerParams(dimension_semantics=("parallel",))


def _full2d(shape):
    return pl.BlockSpec(shape, lambda i: (0, 0))


def mhatt_forward(params, v, k, q, mask=None, *, head=8):
    """Fused MHAtt forward.

    v/k/q: (b, n, hidden) float arrays.
    mask : broadcastable to (b, 1, 1, nk), True/1 == masked (key-padding), or None.
    """
    b, nq, hidden = q.shape
    nk = k.shape[1]
    hs = hidden // 8                 # PyTorch quirk: head_size = hidden_dim / 8
    if head * hs != hidden:
        raise ValueError("fused kernel requires head * (hidden // 8) == hidden")
    scale = 1.0 / math.sqrt(hs)
    f32 = jnp.float32

    wq, wk, wv, wm = (params["wq"].astype(f32), params["wk"].astype(f32),
                      params["wv"].astype(f32), params["wm"].astype(f32))
    bq, bk, bv, bm = (params["bq"].astype(f32), params["bk"].astype(f32),
                      params["bv"].astype(f32), params["bm"].astype(f32))

    if mask is not None:
        # Keep the mask un-broadcast: (b, 1, nk) float, expanded inside the
        # kernel — avoids materializing head*nq duplicated copies in HBM.
        # TODO(synk): per-query masks of shape (..., nq, nk) would need an
        # (nq, nk) mask block per batch; only key-padding masks handled here.
        m = jnp.broadcast_to(jnp.asarray(mask), (b, 1, 1, nk))
        m = m.astype(f32).reshape(b, 1, nk)

    out_shape = jax.ShapeDtypeStruct((b, nq, hidden), f32)
    out_spec = pl.BlockSpec((1, nq, hidden), lambda i: (i, 0, 0))
    wspec = _full2d((hidden, hidden))
    bspec = _full2d((1, hidden))

    if (q is k) and (k is v):
        # Self-attention fast path: fuse Q/K/V into one (D, 3D) matmul.
        w_qkv = jnp.concatenate([wq, wk, wv], axis=1)              # (D, 3D)
        b_qkv = jnp.concatenate([bq, bk, bv], axis=0).reshape(1, 3 * hidden)
        x = q.astype(f32)
        x_spec = pl.BlockSpec((1, nq, hidden), lambda i: (i, 0, 0))
        common_specs = [_full2d((hidden, 3 * hidden)), _full2d((1, 3 * hidden)),
                        wspec, bspec]
        if mask is None:
            kern = functools.partial(_mhatt_self_kernel_nomask, head=head,
                                     hs=hs, hidden=hidden, scale=scale)
            return pl.pallas_call(
                kern, out_shape=out_shape, grid=(b,),
                in_specs=[x_spec] + common_specs, out_specs=out_spec,
                compiler_params=_COMPILER_PARAMS,
            )(x, w_qkv, b_qkv, wm, bm.reshape(1, hidden))
        kern = functools.partial(_mhatt_self_kernel, head=head, hs=hs,
                                 hidden=hidden, scale=scale)
        m_spec = pl.BlockSpec((1, 1, nk), lambda i: (i, 0, 0))
        return pl.pallas_call(
            kern, out_shape=out_shape, grid=(b,),
            in_specs=[x_spec, m_spec] + common_specs, out_specs=out_spec,
            compiler_params=_COMPILER_PARAMS,
        )(x, m, w_qkv, b_qkv, wm, bm.reshape(1, hidden))

    # General (cross-attention) path.
    qf, kf, vf = q.astype(f32), k.astype(f32), v.astype(f32)
    q_spec = pl.BlockSpec((1, nq, hidden), lambda i: (i, 0, 0))
    kv_spec = pl.BlockSpec((1, nk, hidden), lambda i: (i, 0, 0))
    w_b_specs = [wspec, bspec] * 4
    w_b_args = (wq, bq.reshape(1, hidden), wk, bk.reshape(1, hidden),
                wv, bv.reshape(1, hidden), wm, bm.reshape(1, hidden))
    if mask is None:
        kern = functools.partial(_mhatt_cross_kernel_nomask, head=head,
                                 hs=hs, scale=scale)
        return pl.pallas_call(
            kern, out_shape=out_shape, grid=(b,),
            in_specs=[q_spec, kv_spec, kv_spec] + w_b_specs, out_specs=out_spec,
            compiler_params=_COMPILER_PARAMS,
        )(qf, kf, vf, *w_b_args)
    kern = functools.partial(_mhatt_cross_kernel, head=head, hs=hs, scale=scale)
    m_spec = pl.BlockSpec((1, 1, nk), lambda i: (i, 0, 0))
    return pl.pallas_call(
        kern, out_shape=out_shape, grid=(b,),
        in_specs=[q_spec, kv_spec, kv_spec, m_spec] + w_b_specs,
        out_specs=out_spec, compiler_params=_COMPILER_PARAMS,
    )(qf, kf, vf, m, *w_b_args)


# ----------------------------------------------------------------------------
# Parameter init (nn.Linear default) and pure-JAX reference (for verification)
# ----------------------------------------------------------------------------
def init_mhatt_params(key, hidden):
    """Weights stored as (in, out), i.e. transposed w.r.t. PyTorch storage."""
    def linear(kk, d_in, d_out):
        k1, k2 = jax.random.split(kk)
        bound = 1.0 / math.sqrt(d_in)
        w = jax.random.uniform(k1, (d_in, d_out), jnp.float32, -bound, bound)
        bb = jax.random.uniform(k2, (d_out,), jnp.float32, -bound, bound)
        return w, bb
    ks = jax.random.split(key, 4)
    wv, bv = linear(ks[0], hidden, hidden)
    wk, bk = linear(ks[1], hidden, hidden)
    wq, bq = linear(ks[2], hidden, hidden)
    wm, bm = linear(ks[3], hidden, hidden)
    return {"wv": wv, "bv": bv, "wk": wk, "bk": bk,
            "wq": wq, "bq": bq, "wm": wm, "bm": bm}


def mhatt_reference(params, v, k, q, mask=None, *, head=8):
    """Direct transcription of the PyTorch forward (eval-mode dropout)."""
    b, nq, hidden = q.shape
    hs = hidden // 8

    def proj(x, w, bb):
        return (x @ w + bb).reshape(b, -1, head, hs).transpose(0, 2, 1, 3)

    vv = proj(v, params["wv"], params["bv"])
    kk = proj(k, params["wk"], params["bk"])
    qq = proj(q, params["wq"], params["bq"])
    s = jnp.einsum("bhqd,bhkd->bhqk", qq, kk) / math.sqrt(hs)
    if mask is not None:
        s = jnp.where(mask, jnp.float32(-65504.0), s)
    p = jax.nn.softmax(s, axis=-1)
    att = jnp.einsum("bhqk,bhkd->bhqd", p, vv)
    att = att.transpose(0, 2, 1, 3).reshape(b, -1, hidden)
    return att @ params["wm"] + params["bm"]


# ----------------------------------------------------------------------------
if __name__ == "__main__":
    hidden, head = 64, 8            # head_size = hidden // 8 = 8
    b, n_kv, n_q = 2, 16, 8
    root = jax.random.PRNGKey(0)
    k_par, k_x, k_q, k_m1, k_m2 = jax.random.split(root, 5)

    params = init_mhatt_params(k_par, hidden)
    x = jax.random.normal(k_x, (b, n_kv, hidden), jnp.float32)   # self-attn input
    qx = jax.random.normal(k_q, (b, n_q, hidden), jnp.float32)   # cross-attn queries

    # Key-padding masks, True == masked; force key 0 visible so no row is fully masked.
    mask_self = jax.random.uniform(k_m1, (b, 1, 1, n_kv)) < 0.2
    mask_cross = jax.random.uniform(k_m2, (b, 1, 1, n_kv)) < 0.2
    mask_self = mask_self.at[:, :, :, 0].set(False)
    mask_cross = mask_cross.at[:, :, :, 0].set(False)

    # 1) masked self-attention (fused-QKV fast path)
    out_self = mhatt_forward(params, x, x, x, mask_self, head=head)
    # 2) unmasked self-attention (mask-free kernel variant)
    out_self_nm = mhatt_forward(params, x, x, x, None, head=head)
    # 3) masked cross-attention (general path; PyTorch arg order is (v, k, q, mask))
    out_cross = mhatt_forward(params, x, x, qx, mask_cross, head=head)

    out_self, out_self_nm, out_cross = jax.tree_util.tree_map(
        jax.block_until_ready, (out_self, out_self_nm, out_cross))

    assert out_self.shape == (b, n_kv, hidden)
    assert out_self_nm.shape == (b, n_kv, hidden)
    assert out_cross.shape == (b, n_q, hidden)

    np.testing.assert_allclose(
        out_self, mhatt_reference(params, x, x, x, mask_self, head=head),
        rtol=2e-2, atol=2e-2)
    np.testing.assert_allclose(
        out_self_nm, mhatt_reference(params, x, x, x, None, head=head),
        rtol=2e-2, atol=2e-2)
    np.testing.assert_allclose(
        out_cross, mhatt_reference(params, x, x, qx, mask_cross, head=head),
        rtol=2e-2, atol=2e-2)

    print("KERNEL_OK")
</pallas_src>

<mosaic_0001>
module attributes {stable_mosaic.version = 11 : i64} {
  func.func @_mhatt_self_kernel(%arg0: i32, %arg1: memref<1x16x64xf32, #tpu.memory_space<vmem>>, %arg2: memref<1x1x16xf32, #tpu.memory_space<vmem>>, %arg3: memref<64x192xf32, #tpu.memory_space<vmem>>, %arg4: memref<1x192xf32, #tpu.memory_space<vmem>>, %arg5: memref<64x64xf32, #tpu.memory_space<vmem>>, %arg6: memref<1x64xf32, #tpu.memory_space<vmem>>, %arg7: memref<1x16x64xf32, #tpu.memory_space<vmem>>) attributes {dimension_semantics = [#tpu.dimension_semantics<parallel>], iteration_bounds = array<i64: 2>, scalar_prefetch = 0 : i64, scratch_operands = 0 : i64, tpu.core_type = #tpu.core_type<tc>, window_params = [{transform_indices = @transform_0, window_bounds = array<i64: 1, 16, 64>}, {transform_indices = @transform_1, window_bounds = array<i64: 1, 1, 16>}, {pipeline_mode = #tpu.pipeline_mode<synchronous>, transform_indices = @transform_2, window_bounds = array<i64: 64, 192>}, {pipeline_mode = #tpu.pipeline_mode<synchronous>, transform_indices = @transform_3, window_bounds = array<i64: 1, 192>}, {pipeline_mode = #tpu.pipeline_mode<synchronous>, transform_indices = @transform_4, window_bounds = array<i64: 64, 64>}, {pipeline_mode = #tpu.pipeline_mode<synchronous>, transform_indices = @transform_5, window_bounds = array<i64: 1, 64>}, {transform_indices = @transform_6, window_bounds = array<i64: 1, 16, 64>}]} {
    %c0 = arith.constant 0 : index
    %c0_0 = arith.constant 0 : index
    %c0_1 = arith.constant 0 : index
    %0 = vector.load %arg1[%c0, %c0_0, %c0_1] : memref<1x16x64xf32, #tpu.memory_space<vmem>>, vector<1x16x64xf32>
    %1 = vector.shape_cast %0 : vector<1x16x64xf32> to vector<16x64xf32>
    %c0_2 = arith.constant 0 : index
    %c0_3 = arith.constant 0 : index
    %2 = vector.load %arg3[%c0_2, %c0_3] : memref<64x192xf32, #tpu.memory_space<vmem>>, vector<64x192xf32>
    %cst = arith.constant dense<0.000000e+00> : vector<16x192xf32>
    %3 = tpu.matmul %1, %2, %cst {dimension_numbers = #tpu.dot_dimension_numbers<[1], [0], [0], [1], [0, 0, 1, 1], [], []>} : vector<16x64xf32>, vector<64x192xf32>, vector<16x192xf32> -> vector<16x192xf32>
    %c0_4 = arith.constant 0 : index
    %c0_5 = arith.constant 0 : index
    %4 = vector.load %arg4[%c0_4, %c0_5] : memref<1x192xf32, #tpu.memory_space<vmem>>, vector<1x192xf32>
    %5 = vector.broadcast %4 : vector<1x192xf32> to vector<16x192xf32>
    %6 = arith.addf %3, %5 : vector<16x192xf32>
    %7 = vector.extract_strided_slice %6 {offsets = [0, 0], sizes = [16, 64], strides = [1, 1]} : vector<16x192xf32> to vector<16x64xf32>
    %8 = vector.extract_strided_slice %6 {offsets = [0, 64], sizes = [16, 64], strides = [1, 1]} : vector<16x192xf32> to vector<16x64xf32>
    %9 = vector.extract_strided_slice %6 {offsets = [0, 128], sizes = [16, 64], strides = [1, 1]} : vector<16x192xf32> to vector<16x64xf32>
    %c0_6 = arith.constant 0 : index
    %c0_7 = arith.constant 0 : index
    %c0_8 = arith.constant 0 : index
    %10 = vector.load %arg2[%c0_6, %c0_7, %c0_8] : memref<1x1x16xf32, #tpu.memory_space<vmem>>, vector<1x1x16xf32>
    %11 = vector.shape_cast %10 : vector<1x1x16xf32> to vector<1x16xf32>
    %c0_9 = arith.constant 0 : index
    %c0_10 = arith.constant 0 : index
    %12 = vector.load %arg5[%c0_9, %c0_10] : memref<64x64xf32, #tpu.memory_space<vmem>>, vector<64x64xf32>
    %c0_11 = arith.constant 0 : index
    %c0_12 = arith.constant 0 : index
    %13 = vector.load %arg6[%c0_11, %c0_12] : memref<1x64xf32, #tpu.memory_space<vmem>>, vector<1x64xf32>
    %14 = vector.extract_strided_slice %7 {offsets = [0, 0], sizes = [16, 8], strides = [1, 1]} : vector<16x64xf32> to vector<16x8xf32>
    %15 = vector.extract_strided_slice %8 {offsets = [0, 0], sizes = [16, 8], strides = [1, 1]} : vector<16x64xf32> to vector<16x8xf32>
    %16 = vector.extract_strided_slice %9 {offsets = [0, 0], sizes = [16, 8], strides = [1, 1]} : vector<16x64xf32> to vector<16x8xf32>
    %cst_13 = arith.constant dense<0.000000e+00> : vector<16x16xf32>
    %17 = tpu.matmul %14, %15, %cst_13 {dimension_numbers = #tpu.dot_dimension_numbers<[1], [1], [0], [0], [0, 0, 1, 0], [], []>} : vector<16x8xf32>, vector<16x8xf32>, vector<16x16xf32> -> vector<16x16xf32>
    %cst_14 = arith.constant 0.353553385 : f32
    %18 = vector.broadcast %cst_14 : f32 to vector<16x16xf32>
    %19 = arith.mulf %17, %18 : vector<16x16xf32>
    %cst_15 = arith.constant 5.000000e-01 : f32
    %20 = vector.broadcast %cst_15 : f32 to vector<1x16xf32>
    %21 = arith.cmpf ogt, %11, %20 : vector<1x16xf32>
    %cst_16 = arith.constant -6.550400e+04 : f32
    %22 = vector.shape_cast %21 : vector<1x16xi1> to vector<1x16xi1>
    %23 = vector.broadcast %22 : vector<1x16xi1> to vector<16x16xi1>
    %24 = vector.broadcast %cst_16 : f32 to vector<16x16xf32>
    %25 = arith.select %23, %24, %19 : vector<16x16xi1>, vector<16x16xf32>
    %cst_17 = arith.constant dense<0xFF800000> : vector<16xf32>
    %26 = vector.multi_reduction <maximumf>, %25, %cst_17 [1] : vector<16x16xf32> to vector<16xf32>
    %27 = vector.shape_cast %26 : vector<16xf32> to vector<16x1xf32>
    %28 = vector.broadcast %27 : vector<16x1xf32> to vector<16x16xf32>
    %29 = arith.subf %25, %28 : vector<16x16xf32>
    %30 = math.exp %29 : vector<16x16xf32>
    %cst_18 = arith.constant dense<0.000000e+00> : vector<16xf32>
    %31 = vector.multi_reduction <add>, %30, %cst_18 [1] : vector<16x16xf32> to vector<16xf32>
    %32 = vector.shape_cast %31 : vector<16xf32> to vector<16x1xf32>
    %33 = tpu.reciprocal %32 {approx = true} : vector<16x1xf32> -> vector<16x1xf32>
    %34 = vector.broadcast %33 : vector<16x1xf32> to vector<16x16xf32>
    %35 = arith.mulf %30, %34 : vector<16x16xf32>
    %cst_19 = arith.constant dense<0.000000e+00> : vector<16x8xf32>
    %36 = tpu.matmul %35, %16, %cst_19 {dimension_numbers = #tpu.dot_dimension_numbers<[1], [0], [0], [1], [0, 0, 1, 1], [], []>} : vector<16x16xf32>, vector<16x8xf32>, vector<16x8xf32> -> vector<16x8xf32>
    %37 = vector.extract_strided_slice %7 {offsets = [0, 8], sizes = [16, 8], strides = [1, 1]} : vector<16x64xf32> to vector<16x8xf32>
    %38 = vector.extract_strided_slice %8 {offsets = [0, 8], sizes = [16, 8], strides = [1, 1]} : vector<16x64xf32> to vector<16x8xf32>
    %39 = vector.extract_strided_slice %9 {offsets = [0, 8], sizes = [16, 8], strides = [1, 1]} : vector<16x64xf32> to vector<16x8xf32>
    %cst_20 = arith.constant dense<0.000000e+00> : vector<16x16xf32>
    %40 = tpu.matmul %37, %38, %cst_20 {dimension_numbers = #tpu.dot_dimension_numbers<[1], [1], [0], [0], [0, 0, 1, 0], [], []>} : vector<16x8xf32>, vector<16x8xf32>, vector<16x16xf32> -> vector<16x16xf32>
    %cst_21 = arith.constant 0.353553385 : f32
    %41 = vector.broadcast %cst_21 : f32 to vector<16x16xf32>
    %42 = arith.mulf %40, %41 : vector<16x16xf32>
    %cst_22 = arith.constant 5.000000e-01 : f32
    %43 = vector.broadcast %cst_22 : f32 to vector<1x16xf32>
    %44 = arith.cmpf ogt, %11, %43 : vector<1x16xf32>
    %cst_23 = arith.constant -6.550400e+04 : f32
    %45 = vector.shape_cast %44 : vector<1x16xi1> to vector<1x16xi1>
    %46 = vector.broadcast %45 : vector<1x16xi1> to vector<16x16xi1>
    %47 = vector.broadcast %cst_23 : f32 to vector<16x16xf32>
    %48 = arith.select %46, %47, %42 : vector<16x16xi1>, vector<16x16xf32>
    %cst_24 = arith.constant dense<0xFF800000> : vector<16xf32>
    %49 = vector.multi_reduction <maximumf>, %48, %cst_24 [1] : vector<16x16xf32> to vector<16xf32>
    %50 = vector.shape_cast %49 : vector<16xf32> to vector<16x1xf32>
    %51 = vector.broadcast %50 : vector<16x1xf32> to vector<16x16xf32>
    %52 = arith.subf %48, %51 : vector<16x16xf32>
    %53 = math.exp %52 : vector<16x16xf32>
    %cst_25 = arith.constant dense<0.000000e+00> : vector<16xf32>
    %54 = vector.multi_reduction <add>, %53, %cst_25 [1] : vector<16x16xf32> to vector<16xf32>
    %55 = vector.shape_cast %54 : vector<16xf32> to vector<16x1xf32>
    %56 = tpu.reciprocal %55 {approx = true} : vector<16x1xf32> -> vector<16x1xf32>
    %57 = vector.broadcast %56 : vector<16x1xf32> to vector<16x16xf32>
    %58 = arith.mulf %53, %57 : vector<16x16xf32>
    %cst_26 = arith.constant dense<0.000000e+00> : vector<16x8xf32>
    %59 = tpu.matmul %58, %39, %cst_26 {dimension_numbers = #tpu.dot_dimension_numbers<[1], [0], [0], [1], [0, 0, 1, 1], [], []>} : vector<16x16xf32>, vector<16x8xf32>, vector<16x8xf32> -> vector<16x8xf32>
    %60 = vector.extract_strided_slice %7 {offsets = [0, 16], sizes = [16, 8], strides = [1, 1]} : vector<16x64xf32> to vector<16x8xf32>
    %61 = vector.extract_strided_slice %8 {offsets = [0, 16], sizes = [16, 8], strides = [1, 1]} : vector<16x64xf32> to vector<16x8xf32>
    %62 = vector.extract_strided_slice %9 {offsets = [0, 16], sizes = [16, 8], strides = [1, 1]} : vector<16x64xf32> to vector<16x8xf32>
    %cst_27 = arith.constant dense<0.000000e+00> : vector<16x16xf32>
    %63 = tpu.matmul %60, %61, %cst_27 {dimension_numbers = #tpu.dot_dimension_numbers<[1], [1], [0], [0], [0, 0, 1, 0], [], []>} : vector<16x8xf32>, vector<16x8xf32>, vector<16x16xf32> -> vector<16x16xf32>
    %cst_28 = arith.constant 0.353553385 : f32
    %64 = vector.broadcast %cst_28 : f32 to vector<16x16xf32>
    %65 = arith.mulf %63, %64 : vector<16x16xf32>
    %cst_29 = arith.constant 5.000000e-01 : f32
    %66 = vector.broadcast %cst_29 : f32 to vector<1x16xf32>
    %67 = arith.cmpf ogt, %11, %66 : vector<1x16xf32>
    %cst_30 = arith.constant -6.550400e+04 : f32
    %68 = vector.shape_cast %67 : vector<1x16xi1> to vector<1x16xi1>
    %69 = vector.broadcast %68 : vector<1x16xi1> to vector<16x16xi1>
    %70 = vector.broadcast %cst_30 : f32 to vector<16x16xf32>
    %71 = arith.select %69, %70, %65 : vector<16x16xi1>, vector<16x16xf32>
    %cst_31 = arith.constant dense<0xFF800000> : vector<16xf32>
    %72 = vector.multi_reduction <maximumf>, %71, %cst_31 [1] : vector<16x16xf32> to vector<16xf32>
    %73 = vector.shape_cast %72 : vector<16xf32> to vector<16x1xf32>
    %74 = vector.broadcast %73 : vector<16x1xf32> to vector<16x16xf32>
    %75 = arith.subf %71, %74 : vector<16x16xf32>
    %76 = math.exp %75 : vector<16x16xf32>
    %cst_32 = arith.constant dense<0.000000e+00> : vector<16xf32>
    %77 = vector.multi_reduction <add>, %76, %cst_32 [1] : vector<16x16xf32> to vector<16xf32>
    %78 = vector.shape_cast %77 : vector<16xf32> to vector<16x1xf32>
    %79 = tpu.reciprocal %78 {approx = true} : vector<16x1xf32> -> vector<16x1xf32>
    %80 = vector.broadcast %79 : vector<16x1xf32> to vector<16x16xf32>
    %81 = arith.mulf %76, %80 : vector<16x16xf32>
    %cst_33 = arith.constant dense<0.000000e+00> : vector<16x8xf32>
    %82 = tpu.matmul %81, %62, %cst_33 {dimension_numbers = #tpu.dot_dimension_numbers<[1], [0], [0], [1], [0, 0, 1, 1], [], []>} : vector<16x16xf32>, vector<16x8xf32>, vector<16x8xf32> -> vector<16x8xf32>
    %83 = vector.extract_strided_slice %7 {offsets = [0, 24], sizes = [16, 8], strides = [1, 1]} : vector<16x64xf32> to vector<16x8xf32>
    %84 = vector.extract_strided_slice %8 {offsets = [0, 24], sizes = [16, 8], strides = [1, 1]} : vector<16x64xf32> to vector<16x8xf32>
    %85 = vector.extract_strided_slice %9 {offsets = [0, 24], sizes = [16, 8], strides = [1, 1]} : vector<16x64xf32> to vector<16x8xf32>
    %cst_34 = arith.constant dense<0.000000e+00> : vector<16x16xf32>
    %86 = tpu.matmul %83, %84, %cst_34 {dimension_numbers = #tpu.dot_dimension_numbers<[1], [1], [0], [0], [0, 0, 1, 0], [], []>} : vector<16x8xf32>, vector<16x8xf32>, vector<16x16xf32> -> vector<16x16xf32>
    %cst_35 = arith.constant 0.353553385 : f32
    %87 = vector.broadcast %cst_35 : f32 to vector<16x16xf32>
    %88 = arith.mulf %86, %87 : vector<16x16xf32>
    %cst_36 = arith.constant 5.000000e-01 : f32
    %89 = vector.broadcast %cst_36 : f32 to vector<1x16xf32>
    %90 = arith.cmpf ogt, %11, %89 : vector<1x16xf32>
    %cst_37 = arith.constant -6.550400e+04 : f32
    %91 = vector.shape_cast %90 : vector<1x16xi1> to vector<1x16xi1>
    %92 = vector.broadcast %91 : vector<1x16xi1> to vector<16x16xi1>
    %93 = vector.broadcast %cst_37 : f32 to vector<16x16xf32>
    %94 = arith.select %92, %93, %88 : vector<16x16xi1>, vector<16x16xf32>
    %cst_38 = arith.constant dense<0xFF800000> : vector<16xf32>
    %95 = vector.multi_reduction <maximumf>, %94, %cst_38 [1] : vector<16x16xf32> to vector<16xf32>
    %96 = vector.shape_cast %95 : vector<16xf32> to vector<16x1xf32>
    %97 = vector.broadcast %96 : vector<16x1xf32> to vector<16x16xf32>
    %98 = arith.subf %94, %97 : vector<16x16xf32>
    %99 = math.exp %98 : vector<16x16xf32>
    %cst_39 = arith.constant dense<0.000000e+00> : vector<16xf32>
    %100 = vector.multi_reduction <add>, %99, %cst_39 [1] : vector<16x16xf32> to vector<16xf32>
    %101 = vector.shape_cast %100 : vector<16xf32> to vector<16x1xf32>
    %102 = tpu.reciprocal %101 {approx = true} : vector<16x1xf32> -> vector<16x1xf32>
    %103 = vector.broadcast %102 : vector<16x1xf32> to vector<16x16xf32>
    %104 = arith.mulf %99, %103 : vector<16x16xf32>
    %cst_40 = arith.constant dense<0.000000e+00> : vector<16x8xf32>
    %105 = tpu.matmul %104, %85, %cst_40 {dimension_numbers = #tpu.dot_dimension_numbers<[1], [0], [0], [1], [0, 0, 1, 1], [], []>} : vector<16x16xf32>, vector<16x8xf32>, vector<16x8xf32> -> vector<16x8xf32>
    %106 = vector.extract_strided_slice %7 {offsets = [0, 32], sizes = [16, 8], strides = [1, 1]} : vector<16x64xf32> to vector<16x8xf32>
    %107 = vector.extract_strided_slice %8 {offsets = [0, 32], sizes = [16, 8], strides = [1, 1]} : vector<16x64xf32> to vector<16x8xf32>
    %108 = vector.extract_strided_slice %9 {offsets = [0, 32], sizes = [16, 8], strides = [1, 1]} : vector<16x64xf32> to vector<16x8xf32>
    %cst_41 = arith.constant dense<0.000000e+00> : vector<16x16xf32>
    %109 = tpu.matmul %106, %107, %cst_41 {dimension_numbers = #tpu.dot_dimension_numbers<[1], [1], [0], [0], [0, 0, 1, 0], [], []>} : vector<16x8xf32>, vector<16x8xf32>, vector<16x16xf32> -> vector<16x16xf32>
    %cst_42 = arith.constant 0.353553385 : f32
    %110 = vector.broadcast %cst_42 : f32 to vector<16x16xf32>
    %111 = arith.mulf %109, %110 : vector<16x16xf32>
    %cst_43 = arith.constant 5.000000e-01 : f32
    %112 = vector.broadcast %cst_43 : f32 to vector<1x16xf32>
    %113 = arith.cmpf ogt, %11, %112 : vector<1x16xf32>
    %cst_44 = arith.constant -6.550400e+04 : f32
    %114 = vector.shape_cast %113 : vector<1x16xi1> to vector<1x16xi1>
    %115 = vector.broadcast %114 : vector<1x16xi1> to vector<16x16xi1>
    %116 = vector.broadcast %cst_44 : f32 to vector<16x16xf32>
    %117 = arith.select %115, %116, %111 : vector<16x16xi1>, vector<16x16xf32>
    %cst_45 = arith.constant dense<0xFF800000> : vector<16xf32>
    %118 = vector.multi_reduction <maximumf>, %117, %cst_45 [1] : vector<16x16xf32> to vector<16xf32>
    %119 = vector.shape_cast %118 : vector<16xf32> to vector<16x1xf32>
    %120 = vector.broadcast %119 : vector<16x1xf32> to vector<16x16xf32>
    %121 = arith.subf %117, %120 : vector<16x16xf32>
    %122 = math.exp %121 : vector<16x16xf32>
    %cst_46 = arith.constant dense<0.000000e+00> : vector<16xf32>
    %123 = vector.multi_reduction <add>, %122, %cst_46 [1] : vector<16x16xf32> to vector<16xf32>
    %124 = vector.shape_cast %123 : vector<16xf32> to vector<16x1xf32>
    %125 = tpu.reciprocal %124 {approx = true} : vector<16x1xf32> -> vector<16x1xf32>
    %126 = vector.broadcast %125 : vector<16x1xf32> to vector<16x16xf32>
    %127 = arith.mulf %122, %126 : vector<16x16xf32>
    %cst_47 = arith.constant dense<0.000000e+00> : vector<16x8xf32>
    %128 = tpu.matmul %127, %108, %cst_47 {dimension_numbers = #tpu.dot_dimension_numbers<[1], [0], [0], [1], [0, 0, 1, 1], [], []>} : vector<16x16xf32>, vector<16x8xf32>, vector<16x8xf32> -> vector<16x8xf32>
    %129 = vector.extract_strided_slice %7 {offsets = [0, 40], sizes = [16, 8], strides = [1, 1]} : vector<16x64xf32> to vector<16x8xf32>
    %130 = vector.extract_strided_slice %8 {offsets = [0, 40], sizes = [16, 8], strides = [1, 1]} : vector<16x64xf32> to vector<16x8xf32>
    %131 = vector.extract_strided_slice %9 {offsets = [0, 40], sizes = [16, 8], strides = [1, 1]} : vector<16x64xf32> to vector<16x8xf32>
    %cst_48 = arith.constant dense<0.000000e+00> : vector<16x16xf32>
    %132 = tpu.matmul %129, %130, %cst_48 {dimension_numbers = #tpu.dot_dimension_numbers<[1], [1], [0], [0], [0, 0, 1, 0], [], []>} : vector<16x8xf32>, vector<16x8xf32>, vector<16x16xf32> -> vector<16x16xf32>
    %cst_49 = arith.constant 0.353553385 : f32
    %133 = vector.broadcast %cst_49 : f32 to vector<16x16xf32>
    %134 = arith.mulf %132, %133 : vector<16x16xf32>
    %cst_50 = arith.constant 5.000000e-01 : f32
    %135 = vector.broadcast %cst_50 : f32 to vector<1x16xf32>
    %136 = arith.cmpf ogt, %11, %135 : vector<1x16xf32>
    %cst_51 = arith.constant -6.550400e+04 : f32
    %137 = vector.shape_cast %136 : vector<1x16xi1> to vector<1x16xi1>
    %138 = vector.broadcast %137 : vector<1x16xi1> to vector<16x16xi1>
    %139 = vector.broadcast %cst_51 : f32 to vector<16x16xf32>
    %140 = arith.select %138, %139, %134 : vector<16x16xi1>, vector<16x16xf32>
    %cst_52 = arith.constant dense<0xFF800000> : vector<16xf32>
    %141 = vector.multi_reduction <maximumf>, %140, %cst_52 [1] : vector<16x16xf32> to vector<16xf32>
    %142 = vector.shape_cast %141 : vector<16xf32> to vector<16x1xf32>
    %143 = vector.broadcast %142 : vector<16x1xf32> to vector<16x16xf32>
    %144 = arith.subf %140, %143 : vector<16x16xf32>
    %145 = math.exp %144 : vector<16x16xf32>
    %cst_53 = arith.constant dense<0.000000e+00> : vector<16xf32>
    %146 = vector.multi_reduction <add>, %145, %cst_53 [1] : vector<16x16xf32> to vector<16xf32>
    %147 = vector.shape_cast %146 : vector<16xf32> to vector<16x1xf32>
    %148 = tpu.reciprocal %147 {approx = true} : vector<16x1xf32> -> vector<16x1xf32>
    %149 = vector.broadcast %148 : vector<16x1xf32> to vector<16x16xf32>
    %150 = arith.mulf %145, %149 : vector<16x16xf32>
    %cst_54 = arith.constant dense<0.000000e+00> : vector<16x8xf32>
    %151 = tpu.matmul %150, %131, %cst_54 {dimension_numbers = #tpu.dot_dimension_numbers<[1], [0], [0], [1], [0, 0, 1, 1], [], []>} : vector<16x16xf32>, vector<16x8xf32>, vector<16x8xf32> -> vector<16x8xf32>
    %152 = vector.extract_strided_slice %7 {offsets = [0, 48], sizes = [16, 8], strides = [1, 1]} : vector<16x64xf32> to vector<16x8xf32>
    %153 = vector.extract_strided_slice %8 {offsets = [0, 48], sizes = [16, 8], strides = [1, 1]} : vector<16x64xf32> to vector<16x8xf32>
    %154 = vector.extract_strided_slice %9 {offsets = [0, 48], sizes = [16, 8], strides = [1, 1]} : vector<16x64xf32> to vector<16x8xf32>
    %cst_55 = arith.constant dense<0.000000e+00> : vector<16x16xf32>
    %155 = tpu.matmul %152, %153, %cst_55 {dimension_numbers = #tpu.dot_dimension_numbers<[1], [1], [0], [0], [0, 0, 1, 0], [], []>} : vector<16x8xf32>, vector<16x8xf32>, vector<16x16xf32> -> vector<16x16xf32>
    %cst_56 = arith.constant 0.353553385 : f32
    %156 = vector.broadcast %cst_56 : f32 to vector<16x16xf32>
    %157 = arith.mulf %155, %156 : vector<16x16xf32>
    %cst_57 = arith.constant 5.000000e-01 : f32
    %158 = vector.broadcast %cst_57 : f32 to vector<1x16xf32>
    %159 = arith.cmpf ogt, %11, %158 : vector<1x16xf32>
    %cst_58 = arith.constant -6.550400e+04 : f32
    %160 = vector.shape_cast %159 : vector<1x16xi1> to vector<1x16xi1>
    %161 = vector.broadcast %160 : vector<1x16xi1> to vector<16x16xi1>
    %162 = vector.broadcast %cst_58 : f32 to vector<16x16xf32>
    %163 = arith.select %161, %162, %157 : vector<16x16xi1>, vector<16x16xf32>
    %cst_59 = arith.constant dense<0xFF800000> : vector<16xf32>
    %164 = vector.multi_reduction <maximumf>, %163, %cst_59 [1] : vector<16x16xf32> to vector<16xf32>
    %165 = vector.shape_cast %164 : vector<16xf32> to vector<16x1xf32>
    %166 = vector.broadcast %165 : vector<16x1xf32> to vector<16x16xf32>
    %167 = arith.subf %163, %166 : vector<16x16xf32>
    %168 = math.exp %167 : vector<16x16xf32>
    %cst_60 = arith.constant dense<0.000000e+00> : vector<16xf32>
    %169 = vector.multi_reduction <add>, %168, %cst_60 [1] : vector<16x16xf32> to vector<16xf32>
    %170 = vector.shape_cast %169 : vector<16xf32> to vector<16x1xf32>
    %171 = tpu.reciprocal %170 {approx = true} : vector<16x1xf32> -> vector<16x1xf32>
    %172 = vector.broadcast %171 : vector<16x1xf32> to vector<16x16xf32>
    %173 = arith.mulf %168, %172 : vector<16x16xf32>
    %cst_61 = arith.constant dense<0.000000e+00> : vector<16x8xf32>
    %174 = tpu.matmul %173, %154, %cst_61 {dimension_numbers = #tpu.dot_dimension_numbers<[1], [0], [0], [1], [0, 0, 1, 1], [], []>} : vector<16x16xf32>, vector<16x8xf32>, vector<16x8xf32> -> vector<16x8xf32>
    %175 = vector.extract_strided_slice %7 {offsets = [0, 56], sizes = [16, 8], strides = [1, 1]} : vector<16x64xf32> to vector<16x8xf32>
    %176 = vector.extract_strided_slice %8 {offsets = [0, 56], sizes = [16, 8], strides = [1, 1]} : vector<16x64xf32> to vector<16x8xf32>
    %177 = vector.extract_strided_slice %9 {offsets = [0, 56], sizes = [16, 8], strides = [1, 1]} : vector<16x64xf32> to vector<16x8xf32>
    %cst_62 = arith.constant dense<0.000000e+00> : vector<16x16xf32>
    %178 = tpu.matmul %175, %176, %cst_62 {dimension_numbers = #tpu.dot_dimension_numbers<[1], [1], [0], [0], [0, 0, 1, 0], [], []>} : vector<16x8xf32>, vector<16x8xf32>, vector<16x16xf32> -> vector<16x16xf32>
    %cst_63 = arith.constant 0.353553385 : f32
    %179 = vector.broadcast %cst_63 : f32 to vector<16x16xf32>
    %180 = arith.mulf %178, %179 : vector<16x16xf32>
    %cst_64 = arith.constant 5.000000e-01 : f32
    %181 = vector.broadcast %cst_64 : f32 to vector<1x16xf32>
    %182 = arith.cmpf ogt, %11, %181 : vector<1x16xf32>
    %cst_65 = arith.constant -6.550400e+04 : f32
    %183 = vector.shape_cast %182 : vector<1x16xi1> to vector<1x16xi1>
    %184 = vector.broadcast %183 : vector<1x16xi1> to vector<16x16xi1>
    %185 = vector.broadcast %cst_65 : f32 to vector<16x16xf32>
    %186 = arith.select %184, %185, %180 : vector<16x16xi1>, vector<16x16xf32>
    %cst_66 = arith.constant dense<0xFF800000> : vector<16xf32>
    %187 = vector.multi_reduction <maximumf>, %186, %cst_66 [1] : vector<16x16xf32> to vector<16xf32>
    %188 = vector.shape_cast %187 : vector<16xf32> to vector<16x1xf32>
    %189 = vector.broadcast %188 : vector<16x1xf32> to vector<16x16xf32>
    %190 = arith.subf %186, %189 : vector<16x16xf32>
    %191 = math.exp %190 : vector<16x16xf32>
    %cst_67 = arith.constant dense<0.000000e+00> : vector<16xf32>
    %192 = vector.multi_reduction <add>, %191, %cst_67 [1] : vector<16x16xf32> to vector<16xf32>
    %193 = vector.shape_cast %192 : vector<16xf32> to vector<16x1xf32>
    %194 = tpu.reciprocal %193 {approx = true} : vector<16x1xf32> -> vector<16x1xf32>
    %195 = vector.broadcast %194 : vector<16x1xf32> to vector<16x16xf32>
    %196 = arith.mulf %191, %195 : vector<16x16xf32>
    %cst_68 = arith.constant dense<0.000000e+00> : vector<16x8xf32>
    %197 = tpu.matmul %196, %177, %cst_68 {dimension_numbers = #tpu.dot_dimension_numbers<[1], [0], [0], [1], [0, 0, 1, 1], [], []>} : vector<16x16xf32>, vector<16x8xf32>, vector<16x8xf32> -> vector<16x8xf32>
    %198 = tpu.concatenate %36, %59, %82, %105, %128, %151, %174, %197 in 1 : vector<16x8xf32>, vector<16x8xf32>, vector<16x8xf32>, vector<16x8xf32>, vector<16x8xf32>, vector<16x8xf32>, vector<16x8xf32>, vector<16x8xf32> -> vector<16x64xf32>
    %cst_69 = arith.constant dense<0.000000e+00> : vector<16x64xf32>
    %199 = tpu.matmul %198, %12, %cst_69 {dimension_numbers = #tpu.dot_dimension_numbers<[1], [0], [0], [1], [0, 0, 1, 1], [], []>} : vector<16x64xf32>, vector<64x64xf32>, vector<16x64xf32> -> vector<16x64xf32>
    %200 = vector.broadcast %13 : vector<1x64xf32> to vector<16x64xf32>
    %201 = arith.addf %199, %200 : vector<16x64xf32>
    %c0_70 = arith.constant 0 : index
    %c0_71 = arith.constant 0 : index
    %c0_72 = arith.constant 0 : index
    %202 = vector.load %arg7[%c0_70, %c0_71, %c0_72] : memref<1x16x64xf32, #tpu.memory_space<vmem>>, vector<1x16x64xf32>
    %203 = vector.shape_cast %202 : vector<1x16x64xf32> to vector<16x64xf32>
    %204 = vector.shape_cast %201 : vector<16x64xf32> to vector<1x16x64xf32>
    tpu.vector_store %arg7[%c0_70, %c0_71, %c0_72], %204 {strides = array<i32>} : memref<1x16x64xf32, #tpu.memory_space<vmem>>, vector<1x16x64xf32>,
    return
  }
  func.func @transform_0(%arg0: i32) -> (i32, i32, i32) {
    %c0_i32 = arith.constant 0 : i32
    %c0_i32_0 = arith.constant 0 : i32
    %c0_i32_1 = arith.constant 0 : i32
    return %arg0, %c0_i32, %c0_i32_0 : i32, i32, i32
  }
  func.func @transform_1(%arg0: i32) -> (i32, i32, i32) {
    %c0_i32 = arith.constant 0 : i32
    %c0_i32_0 = arith.constant 0 : i32
    %c0_i32_1 = arith.constant 0 : i32
    return %arg0, %c0_i32, %c0_i32_0 : i32, i32, i32
  }
  func.func @transform_2(%arg0: i32) -> (i32, i32) {
    %c0_i32 = arith.constant 0 : i32
    %c0_i32_0 = arith.constant 0 : i32
    %c0_i32_1 = arith.constant 0 : i32
    return %c0_i32, %c0_i32_0 : i32, i32
  }
  func.func @transform_3(%arg0: i32) -> (i32, i32) {
    %c0_i32 = arith.constant 0 : i32
    %c0_i32_0 = arith.constant 0 : i32
    %c0_i32_1 = arith.constant 0 : i32
    return %c0_i32, %c0_i32_0 : i32, i32
  }
  func.func @transform_4(%arg0: i32) -> (i32, i32) {
    %c0_i32 = arith.constant 0 : i32
    %c0_i32_0 = arith.constant 0 : i32
    %c0_i32_1 = arith.constant 0 : i32
    return %c0_i32, %c0_i32_0 : i32, i32
  }
  func.func @transform_5(%arg0: i32) -> (i32, i32) {
    %c0_i32 = arith.constant 0 : i32
    %c0_i32_0 = arith.constant 0 : i32
    %c0_i32_1 = arith.constant 0 : i32
    return %c0_i32, %c0_i32_0 : i32, i32
  }
  func.func @transform_6(%arg0: i32) -> (i32, i32, i32) {
    %c0_i32 = arith.constant 0 : i32
    %c0_i32_0 = arith.constant 0 : i32
    %c0_i32_1 = arith.constant 0 : i32
    return %arg0, %c0_i32, %c0_i32_0 : i32, i32, i32
  }
}

</mosaic_0001>

<llo_original>
// kernel: tpu_custom_call.1
$region0: #{tpu_custom_call.1}
  #allocation0 [shape = 'u32[]', space=smem, size = 0x4, offset = 0x4, fixed_abs, tag = 'smem constant byte address 0x4 - core index']
  #allocation1 [shape = 'u32[144,128]{1,0:T(1,128)}', space=vmem, size = 0x12000, scoped, tag = 'internal scratch']
  %s0 = inlined_call_operand.hbm [shape: f32[2,16,64], index: 0, kind: input, shape index: {}]
  %s1 = inlined_call_operand.vmem [shape: f32[2,1,16], index: 1, kind: input, shape index: {}]
  %s2 = inlined_call_operand.hbm [shape: f32[64,192], index: 2, kind: input, shape index: {}]
  %s3 = inlined_call_operand.vmem [shape: f32[1,192], index: 3, kind: input, shape index: {}]
  %s4 = inlined_call_operand.hbm [shape: f32[64,64], index: 4, kind: input, shape index: {}]
  %s5 = inlined_call_operand.vmem [shape: f32[1,64], index: 5, kind: input, shape index: {}]
  %s6 = inlined_call_operand.hbm [shape: f32[2,16,64], index: 6, kind: output, shape index: {}]
  %s7 = sld [smem:[#allocation0]]
  $region69: #{tpu_custom_call.1} parent=0
    _
  %s9 = ssub.s32 1, %s7
  %s10 = scalar_select 0, %s9, %s7
  $region1: #{tpu_custom_call.1} parent=0
    #allocation2 [shape = 'u8[16384]{0}', space=vmem, size = 0x4000, scoped, tag = 'input window, operand 0']
    #allocation3 [shape = 's32[2]{0}', space=sflag, size = 0x8, scoped, tag = 'scoped memory for tpu_custom_call.1']
    #allocation4 [shape = 's32[2]{0}', space=sflag, size = 0x8, scoped, tag = 'scoped memory for tpu_custom_call.1']
    #allocation5 [shape = 'u8[65536]{0}', space=vmem, size = 0x10000, scoped, tag = 'input window, operand 2, single buffered']
    #allocation6 [shape = 's32[1]{0}', space=sflag, size = 0x4, scoped, tag = 'scoped memory for tpu_custom_call.1']
    #allocation7 [shape = 'u8[32768]{0}', space=vmem, size = 0x8000, scoped, tag = 'input window, operand 4, single buffered']
    #allocation8 [shape = 'u8[16384]{0}', space=vmem, size = 0x4000, scoped, tag = 'output window, operand 0']
    %11 = vsyncpa [#allocation3], 0
    %s12 = scalar_lea.sflag [#allocation3], 1
    %13 = vsyncpa %s12, 0
    %14 = vsyncpa [#allocation6], 0
    %15 = vsyncpa [#allocation4], 0
    %s16 = scalar_lea.sflag [#allocation4], 1
    %17 = vsyncpa %s16, 0
    loop: start=0, step=1, limit=4
    $region2: #{tpu_custom_call.1} parent=1 // loop_pre_header
      _
    $region3: #{tpu_custom_call.1} parent=1 // loop_header
      %s19 = sphi 0, %s23
      %p20 = scmp.ge.s32.totalorder %s19, 4
      %s29 = sphi 0, %s31
      %s32 = sphi 0, %s29
      %s33 = sphi 0, %s32
      %s49 = sphi 0, %s33
      %s55 = sphi 0, %s57
      %s58 = sphi 0, %s55
      %s59 = sphi 0, %s58
      %s75 = sphi 0, %s59
      %s79 = sphi 0, %s79
      %s81 = sphi 0, %s79
      %s82 = sphi 0, %s81
      %s96 = sphi 0, %s82
      %s100 = sphi 0, %s100
      %s102 = sphi 0, %s100
      %s103 = sphi 0, %s102
      %s117 = sphi 0, %s103
      %s121 = sphi 0, %s121
      %s123 = sphi 0, %s121
      %s124 = sphi 0, %s123
      %s138 = sphi 0, %s124
      %s142 = sphi 0, %s142
      %s144 = sphi 0, %s142
      %s145 = sphi 0, %s144
      %s159 = sphi 0, %s145
      %s165 = sphi 0, %s167
      %s168 = sphi 0, %s165
      %s169 = sphi 0, %s168
      %s185 = sphi 0, %s169
    $region4: #{tpu_custom_call.1} parent=1 // loop_header_branch
      %22 = sbr.rel (%p20) target = $region8
    $region5: #{tpu_custom_call.1} parent=1 // loop_body
      %s24 = ssub.s32 %s19, 1
      %s25 = ssub.s32 %s19, 2
      %s26 = sadd.s32 %s19, 1
      %s27 = ssub.s32 %s19, %s26
      %p28 = scmp.eq.s32.totalorder %s27, 0
      %s30 = sadd.s32 %s29, 1
      %s31 = scalar_select %p28, %s29, %s30
      %p34 = pneg %p28
      %p35 = scmp.eq.s32.totalorder %s19, 1
      %p36 = por %p34, %p35
      %p37 = scmp.ne.s32.totalorder %s29, %s32
      %p38 = scmp.eq.s32.totalorder %s19, 0
      %p39 = por %p37, %p38
      %p40 = scmp.ne.s32.totalorder %s29, %s32
      %p41 = scmp.eq.s32.totalorder %s24, 1
      %p42 = por %p40, %p41
      %p43 = scmp.ne.s32.totalorder %s32, %s33
      %p44 = scmp.eq.s32.totalorder %s24, 0
      %p45 = por %p43, %p44
      %p46 = scmp.ne.s32.totalorder %s32, %s33
      %p47 = scmp.eq.s32.totalorder %s25, 1
      %p48 = por %p46, %p47
      %p50 = scmp.ne.s32.totalorder %s33, %s49
      %p51 = scmp.eq.s32.totalorder %s25, 0
      %p52 = por %p50, %p51
      %s53 = ssub.s32 %s19, %s26
      %p54 = scmp.eq.s32.totalorder %s53, 0
      %s56 = sadd.s32 %s55, 1
      %s57 = scalar_select %p54, %s55, %s56
      %p60 = pneg %p54
      %p61 = scmp.eq.s32.totalorder %s19, 1
      %p62 = por %p60, %p61
      %p63 = scmp.ne.s32.totalorder %s55, %s58
      %p64 = scmp.eq.s32.totalorder %s19, 0
      %p65 = por %p63, %p64
      %p66 = scmp.ne.s32.totalorder %s55, %s58
      %p67 = scmp.eq.s32.totalorder %s24, 1
      %p68 = por %p66, %p67
      %p69 = scmp.ne.s32.totalorder %s58, %s59
      %p70 = scmp.eq.s32.totalorder %s24, 0
      %p71 = por %p69, %p70
      %p72 = scmp.ne.s32.totalorder %s58, %s59
      %p73 = scmp.eq.s32.totalorder %s25, 1
      %p74 = por %p72, %p73
      %p76 = scmp.ne.s32.totalorder %s59, %s75
      %p77 = scmp.eq.s32.totalorder %s25, 0
      %p78 = por %p76, %p77
      %s80 = sadd.s32 %s79, 1
      %p83 = scmp.eq.s32.totalorder %s19, 1
      %p84 = scmp.ne.s32.totalorder %s79, %s81
      %p85 = scmp.eq.s32.totalorder %s19, 0
      %p86 = por %p84, %p85
      %p87 = scmp.ne.s32.totalorder %s79, %s81
      %p88 = scmp.eq.s32.totalorder %s24, 1
      %p89 = por %p87, %p88
      %p90 = scmp.ne.s32.totalorder %s81, %s82
      %p91 = scmp.eq.s32.totalorder %s24, 0
      %p92 = por %p90, %p91
      %p93 = scmp.ne.s32.totalorder %s81, %s82
      %p94 = scmp.eq.s32.totalorder %s25, 1
      %p95 = por %p93, %p94
      %p97 = scmp.ne.s32.totalorder %s82, %s96
      %p98 = scmp.eq.s32.totalorder %s25, 0
      %p99 = por %p97, %p98
      %s101 = sadd.s32 %s100, 1
      %p104 = scmp.eq.s32.totalorder %s19, 1
      %p105 = scmp.ne.s32.totalorder %s100, %s102
      %p106 = scmp.eq.s32.totalorder %s19, 0
      %p107 = por %p105, %p106
      %p108 = scmp.ne.s32.totalorder %s100, %s102
      %p109 = scmp.eq.s32.totalorder %s24, 1
      %p110 = por %p108, %p109
      %p111 = scmp.ne.s32.totalorder %s102, %s103
      %p112 = scmp.eq.s32.totalorder %s24, 0
      %p113 = por %p111, %p112
      %p114 = scmp.ne.s32.totalorder %s102, %s103
      %p115 = scmp.eq.s32.totalorder %s25, 1
      %p116 = por %p114, %p115
      %p118 = scmp.ne.s32.totalorder %s103, %s117
      %p119 = scmp.eq.s32.totalorder %s25, 0
      %p120 = por %p118, %p119
      %s122 = sadd.s32 %s121, 1
      %p125 = scmp.eq.s32.totalorder %s19, 1
      %p126 = scmp.ne.s32.totalorder %s121, %s123
      %p127 = scmp.eq.s32.totalorder %s19, 0
      %p128 = por %p126, %p127
      %p129 = scmp.ne.s32.totalorder %s121, %s123
      %p130 = scmp.eq.s32.totalorder %s24, 1
      %p131 = por %p129, %p130
      %p132 = scmp.ne.s32.totalorder %s123, %s124
      %p133 = scmp.eq.s32.totalorder %s24, 0
      %p134 = por %p132, %p133
      %p135 = scmp.ne.s32.totalorder %s123, %s124
      %p136 = scmp.eq.s32.totalorder %s25, 1
      %p137 = por %p135, %p136
      %p139 = scmp.ne.s32.totalorder %s124, %s138
      %p140 = scmp.eq.s32.totalorder %s25, 0
      %p141 = por %p139, %p140
      %s143 = sadd.s32 %s142, 1
      %p146 = scmp.eq.s32.totalorder %s19, 1
      %p147 = scmp.ne.s32.totalorder %s142, %s144
      %p148 = scmp.eq.s32.totalorder %s19, 0
      %p149 = por %p147, %p148
      %p150 = scmp.ne.s32.totalorder %s142, %s144
      %p151 = scmp.eq.s32.totalorder %s24, 1
      %p152 = por %p150, %p151
      %p153 = scmp.ne.s32.totalorder %s144, %s145
      %p154 = scmp.eq.s32.totalorder %s24, 0
      %p155 = por %p153, %p154
      %p156 = scmp.ne.s32.totalorder %s144, %s145
      %p157 = scmp.eq.s32.totalorder %s25, 1
      %p158 = por %p156, %p157
      %p160 = scmp.ne.s32.totalorder %s145, %s159
      %p161 = scmp.eq.s32.totalorder %s25, 0
      %p162 = por %p160, %p161
      %s163 = ssub.s32 %s19, %s26
      %p164 = scmp.eq.s32.totalorder %s163, 0
      %s166 = sadd.s32 %s165, 1
      %s167 = scalar_select %p164, %s165, %s166
      %p170 = pneg %p164
      %p171 = scmp.eq.s32.totalorder %s19, 1
      %p172 = por %p170, %p171
      %p173 = scmp.ne.s32.totalorder %s165, %s168
      %p174 = scmp.eq.s32.totalorder %s19, 0
      %p175 = por %p173, %p174
      %p176 = scmp.ne.s32.totalorder %s165, %s168
      %p177 = scmp.eq.s32.totalorder %s24, 1
      %p178 = por %p176, %p177
      %p179 = scmp.ne.s32.totalorder %s168, %s169
      %p180 = scmp.eq.s32.totalorder %s24, 0
      %p181 = por %p179, %p180
      %p182 = scmp.ne.s32.totalorder %s168, %s169
      %p183 = scmp.eq.s32.totalorder %s25, 1
      %p184 = por %p182, %p183
      %p186 = scmp.ne.s32.totalorder %s169, %s185
      %p187 = scmp.eq.s32.totalorder %s25, 0
      %p188 = por %p186, %p187
      %p189 = scmp.le.s32.totalorder 1, %s19
      %p190 = scmp.lt.s32.totalorder %s19, 3
      %p191 = pnand %p189, %p190
      %p192 = pneg %p191
      // Predicated region
      $region9: #{tpu_custom_call.1} parent=5 // pred_check
        _
      $region10: #{tpu_custom_call.1} parent=5 // pred_check_branch
        %194 = sbr.rel (%p191) target = $region12
      $region11: #{tpu_custom_call.1} parent=5 // pred_region
        %s195 = ssub.s32 %s19, 1
        // Predicated region
        $region13: #{tpu_custom_call.1} parent=11 // pred_check
          %p196 = pneg %p92
        $region14: #{tpu_custom_call.1} parent=11 // pred_check_branch
          %198 = sbr.rel (%p196) target = $region16
        $region15: #{tpu_custom_call.1} parent=11 // pred_region
          %s200 = ssub.s32 2048, 2048
          %201 = vsyncadd [#allocation6], %s200
          %s202 = sshll.u32 [#allocation5], 4
          %s203 = int_to_ptr.vmem [resolvable:$true] %s202
          %208 = dma.hbm_to_vmem [thread:$0]  %s2, 2048, %s203, [#allocation6], 256, 256, 16
        $region16: #{tpu_custom_call.1} parent=11 // pred_fallthru
          _
        // Predicated region
        $region17: #{tpu_custom_call.1} parent=11 // pred_check
          %p209 = pneg %p113
        $region18: #{tpu_custom_call.1} parent=11 // pred_check_branch
          %211 = sbr.rel (%p209) target = $region20
        $region19: #{tpu_custom_call.1} parent=11 // pred_region
          _
        $region20: #{tpu_custom_call.1} parent=11 // pred_fallthru
          _
        // Predicated region
        $region21: #{tpu_custom_call.1} parent=11 // pred_check
          %p212 = pneg %p134
        $region22: #{tpu_custom_call.1} parent=11 // pred_check_branch
          %214 = sbr.rel (%p212) target = $region24
        $region23: #{tpu_custom_call.1} parent=11 // pred_region
          %s216 = ssub.s32 1024, 1024
          %217 = vsyncadd [#allocation6], %s216
          %s218 = sshll.u32 [#allocation7], 4
          %s219 = int_to_ptr.vmem [resolvable:$true] %s218
          %224 = dma.hbm_to_vmem [thread:$0]  %s4, 1024, %s219, [#allocation6], 128, 128, 8
        $region24: #{tpu_custom_call.1} parent=11 // pred_fallthru
          _
        // Predicated region
        $region25: #{tpu_custom_call.1} parent=11 // pred_check
          %p225 = pneg %p155
        $region26: #{tpu_custom_call.1} parent=11 // pred_check_branch
          %227 = sbr.rel (%p225) target = $region28
        $region27: #{tpu_custom_call.1} parent=11 // pred_region
          _
        $region28: #{tpu_custom_call.1} parent=11 // pred_fallthru
          _
      $region12: #{tpu_custom_call.1} parent=5 // pred_fallthru
        _
      %p228 = scmp.lt.s32.totalorder %s19, 2
      // Predicated region
      $region29: #{tpu_custom_call.1} parent=5 // pred_check
        %p229 = pneg %p228
      $region30: #{tpu_custom_call.1} parent=5 // pred_check_branch
        %231 = sbr.rel (%p229) target = $region32
      $region31: #{tpu_custom_call.1} parent=5 // pred_region
        // Predicated region
        $region33: #{tpu_custom_call.1} parent=31 // pred_check
          %p232 = pneg %p39
        $region34: #{tpu_custom_call.1} parent=31 // pred_check_branch
          %234 = sbr.rel (%p232) target = $region36
        $region35: #{tpu_custom_call.1} parent=31 // pred_region
          %s235 = sand.u32 %s29, 1
          %s236 = scalar_lea.sflag [#allocation3], %s235
          %s237 = sand.u32 %s29, 1
          %s238 = smul.addr %s237, 16
          %s239 = scalar_lea.vmem [#allocation2], %s238
          %s241 = ssub.s32 256, 256
          %242 = vsyncadd %s236, %s241
          %s243 = smul.addr %s19, 2
          %s244 = smul.addr %s243, 128
          %s245 = scalar_lea.hbm %s0, %s244
          %s246 = sshll.u32 %s239, 4
          %s247 = int_to_ptr.vmem [resolvable:$true] %s246
          %252 = dma.hbm_to_vmem [thread:$0]  %s245, 256, %s247, %s236, 128, 128, 8
        $region36: #{tpu_custom_call.1} parent=31 // pred_fallthru
          _
        // Predicated region
        $region37: #{tpu_custom_call.1} parent=31 // pred_check
          %p253 = pneg %p65
        $region38: #{tpu_custom_call.1} parent=31 // pred_check_branch
          %255 = sbr.rel (%p253) target = $region40
        $region39: #{tpu_custom_call.1} parent=31 // pred_region
          %p256 = scmp.lt.s32.totalorder %s19, 1
          %s257 = scalar_select %p256, %s19, 1
          %s258 = scalar_lea.vmem %s1, %s257
        $region40: #{tpu_custom_call.1} parent=31 // pred_fallthru
          _
      $region32: #{tpu_custom_call.1} parent=5 // pred_fallthru
        _
      %p259 = scmp.le.s32.totalorder 1, %s19
      %p260 = scmp.lt.s32.totalorder %s19, 3
      %p261 = pnand %p259, %p260
      %p262 = pneg %p261
      // Predicated region
      $region41: #{tpu_custom_call.1} parent=5 // pred_check
        _
      $region42: #{tpu_custom_call.1} parent=5 // pred_check_branch
        %264 = sbr.rel (%p261) target = $region44
      $region43: #{tpu_custom_call.1} parent=5 // pred_region
        %s265 = ssub.s32 %s19, 1
        %s266 = sand.u32 %s32, 1
        %s267 = scalar_lea.sflag [#allocation3], %s266
        %s268 = sand.u32 %s32, 1
        %s269 = smul.addr %s268, 16
        %s270 = scalar_lea.vmem [#allocation2], %s269
        // Predicated region
        $region45: #{tpu_custom_call.1} parent=43 // pred_check
          %p271 = pneg %p45
        $region46: #{tpu_custom_call.1} parent=43 // pred_check_branch
          %273 = sbr.rel (%p271) target = $region48
        $region47: #{tpu_custom_call.1} parent=43 // pred_region
          %274 = dma.done %s267, 256
        $region48: #{tpu_custom_call.1} parent=43 // pred_fallthru
          _
        // Predicated region
        $region49: #{tpu_custom_call.1} parent=43 // pred_check
          %p275 = pneg %p92
        $region50: #{tpu_custom_call.1} parent=43 // pred_check_branch
          %277 = sbr.rel (%p275) target = $region52
        $region51: #{tpu_custom_call.1} parent=43 // pred_region
          %278 = dma.done [#allocation6], 2048
        $region52: #{tpu_custom_call.1} parent=43 // pred_fallthru
          _
        // Predicated region
        $region53: #{tpu_custom_call.1} parent=43 // pred_check
          %p279 = pneg %p134
        $region54: #{tpu_custom_call.1} parent=43 // pred_check_branch
          %281 = sbr.rel (%p279) target = $region56
        $region55: #{tpu_custom_call.1} parent=43 // pred_region
          %282 = dma.done [#allocation6], 1024
        $region56: #{tpu_custom_call.1} parent=43 // pred_fallthru
          _
        %s283 = sand.u32 %s32, 1
        %s284 = scalar_lea.sflag [#allocation3], %s283
        %s285 = sand.u32 %s32, 1
        %s286 = smul.addr %s285, 16
        %s287 = scalar_lea.vmem [#allocation2], %s286
        %p288 = pneg %p45
        %p289 = pneg %p42
        %p290 = scmp.lt.s32.totalorder %s24, 1
        %s291 = scalar_select %p290, %s24, 1
        %s292 = scalar_lea.vmem %s1, %s291
        %p293 = pneg %p71
        %p294 = pneg %p68
        %p295 = pneg %p92
        %p296 = pneg %p89
        %p297 = pneg %p113
        %p298 = pneg %p110
        %p299 = pneg %p134
        %p300 = pneg %p131
        %p301 = pneg %p155
        %p302 = pneg %p152
        %p303 = pneg %p181
        %p304 = pneg %p178
        %s305 = sand.u32 %s168, 1
        %s306 = scalar_lea.sflag [#allocation4], %s305
        %s307 = sand.u32 %s168, 1
        %s308 = smul.addr %s307, 16
        %s309 = scalar_lea.vmem [#allocation8], %s308
        %p310 = scmp.lt.s32.totalorder %s24, 1
        %s311 = scalar_select %p310, %s24, 1
        %s312 = scalar_lea.vmem %s1, %s311
        %v313 = vld [vmem:[%s270] sm:$0xff]
        %v314 = vld [vmem:[%s270 + $0x8] sm:$0xff]
        %v315 = vld [vmem:[#allocation5] sm:$0xff]
        %v316 = vld [vmem:[#allocation5 + $0x8] sm:$0xff]
        %v317 = vld [vmem:[#allocation5 + $0x10] sm:$0xff]
        %v318 = vld [vmem:[#allocation5 + $0x18] sm:$0xff]
        %v319 = vld [vmem:[#allocation5 + $0x20] sm:$0xff]
        %v320 = vld [vmem:[#allocation5 + $0x28] sm:$0xff]
        %v321 = vld [vmem:[#allocation5 + $0x30] sm:$0xff]
        %v322 = vld [vmem:[#allocation5 + $0x38] sm:$0xff]
        %v323 = vld [vmem:[#allocation5 + $0x40] sm:$0xff]
        %v324 = vld [vmem:[#allocation5 + $0x48] sm:$0xff]
        %v325 = vld [vmem:[#allocation5 + $0x50] sm:$0xff]
        %v326 = vld [vmem:[#allocation5 + $0x58] sm:$0xff]
        %v327 = vld [vmem:[#allocation5 + $0x60] sm:$0xff]
        %v328 = vld [vmem:[#allocation5 + $0x68] sm:$0xff]
        %v329 = vld [vmem:[#allocation5 + $0x70] sm:$0xff]
        %v330 = vld [vmem:[#allocation5 + $0x78] sm:$0xff]
        %v331 = vld [vmem:[%s3] sm:$0x3]
        %v333 = vlaneseq
        %v334 = vshrl.u32 %v333, 7
        %v335 = vsub.s32 0, %v334
        %v336 = vrot.slane %v331, %v335
        %v337 = vlaneseq
        %v338 = vshrl.u32 %v337, 7
        %v339 = vsub.s32 1, %v338
        %v340 = vrot.slane %v331, %v339
        %vm343 = vcmask 523264
        %v345 = vsel %vm343, %v313, 0
        %v348 = vsel %vm343, %v314, 0
        %350 = vmatprep.subr.mxu0 %v316
        %351 = vmatpush1.msra.mxu0 %v315
        %352 = vmatprep.subr.mxu0 %v318
        %353 = vmatpush1.msra.mxu0 %v317
        %354 = vmatprep.subr.mxu0 %v320
        %355 = vmatpush1.msra.mxu0 %v319
        %356 = vmatprep.subr.mxu0 %v322
        %357 = vmatpush1.msra.mxu0 %v321
        %358 = vmatprep.subr.mxu0 %v324
        %359 = vmatpush1.msra.mxu0 %v323
        %360 = vmatprep.subr.mxu0 %v326
        %361 = vmatpush1.msra.mxu0 %v325
        %362 = vmatprep.subr.mxu0 %v328
        %363 = vmatpush1.msra.mxu0 %v327
        %364 = vmatprep.subr.mxu0 %v330
        %365 = vmatpush1.msra.mxu0 %v329
        %366 = vmatprep.subr.mxu0 0.0
        %367 = vmatpush1.msra.mxu0 0.0
        %368 = vmatprep.subr.mxu0 0.0
        %369 = vmatpush1.msra.mxu0 0.0
        %370 = vmatprep.subr.mxu0 0.0
        %371 = vmatpush1.msra.mxu0 0.0
        %372 = vmatprep.subr.mxu0 0.0
        %373 = vmatpush1.msra.mxu0 0.0
        %374 = vmatprep.subr.mxu0 0.0
        %375 = vmatpush1.msra.mxu0 0.0
        %376 = vmatprep.subr.mxu0 0.0
        %377 = vmatpush1.msra.mxu0 0.0
        %378 = vmatprep.subr.mxu0 0.0
        %379 = vmatpush1.msra.mxu0 0.0
        %380 = vmatprep.subr.mxu0 0.0
        %381 = vmatpush1.msra.mxu0 0.0
        %382 = vmatprep.subr.mxu0 0.0
        %383 = vmatpush1.msra.mxu0 0.0
        %384 = vmatprep.subr.mxu0 0.0
        %385 = vmatpush1.msra.mxu0 0.0
        %386 = vmatprep.subr.mxu0 0.0
        %387 = vmatpush1.msra.mxu0 0.0
        %388 = vmatprep.subr.mxu0 0.0
        %389 = vmatpush1.msra.mxu0 0.0
        %390 = vmatprep.subr.mxu0 0.0
        %391 = vmatpush1.msra.mxu0 0.0
        %392 = vmatprep.subr.mxu0 0.0
        %393 = vmatpush1.msra.mxu0 0.0
        %394 = vmatprep.subr.mxu0 0.0
        %395 = vmatpush1.msra.mxu0 0.0
        %396 = vmatprep.subr.mxu0 0.0
        %397 = vmatpush1.msra.mxu0 0.0
        %398 = vmatprep.subr.mxu0 0.0
        %399 = vmatpush1.msra.mxu0 0.0
        %400 = vmatprep.subr.mxu0 0.0
        %401 = vmatpush1.msra.mxu0 0.0
        %402 = vmatprep.subr.mxu0 0.0
        %403 = vmatpush1.msra.mxu0 0.0
        %404 = vmatprep.subr.mxu0 0.0
        %405 = vmatpush1.msra.mxu0 0.0
        %406 = vmatprep.subr.mxu0 0.0
        %407 = vmatpush1.msra.mxu0 0.0
        %408 = vmatprep.subr.mxu0 0.0
        %409 = vmatpush1.msra.mxu0 0.0
        %410 = vmatprep.subr.mxu0 0.0
        %411 = vmatpush1.msra.mxu0 0.0
        %412 = vmatprep.subr.mxu0 0.0
        %413 = vmatpush1.msra.mxu0 0.0
        %414 = vmatprep.mubr.f32.mxu0 0.0
        %415 = vmatmul.mubr.f32.gmra.mrb[0].mxu0 %v345
        %v416 = vpop.f32.mrb[0].mxu0
        %v417 = vadd.f32 %v336, %v416
        %v418 = vpop.f32.mrb[0].mxu0
        %v419 = vadd.f32 %v340, %v418
        %420 = vmatprep.mubr.f32.mxu0 0.0
        %421 = vmatmul.mubr.f32.gmra.mrb[0].mxu0 %v348
        %v422 = vpop.f32.mrb[0].mxu0
        %v423 = vadd.f32 %v336, %v422
        %v424 = vpop.f32.mrb[0].mxu0
        %v425 = vadd.f32 %v340, %v424
        %426 = vdwg.mxu0
        %v427 = vld [vmem:[%s312] sm:$0x1]
        %v428 = vld [vmem:[#allocation7] sm:$0xff]
        %v429 = vld [vmem:[#allocation7 + $0x8] sm:$0xff]
        %v430 = vld [vmem:[#allocation7 + $0x10] sm:$0xff]
        %v431 = vld [vmem:[#allocation7 + $0x18] sm:$0xff]
        %v432 = vld [vmem:[#allocation7 + $0x20] sm:$0xff]
        %v433 = vld [vmem:[#allocation7 + $0x28] sm:$0xff]
        %v434 = vld [vmem:[#allocation7 + $0x30] sm:$0xff]
        %v435 = vld [vmem:[#allocation7 + $0x38] sm:$0xff]
        %v436 = vld [vmem:[%s5] sm:$0x1]
        %439 = vrot.lane.b32.xlu0 %v417, 64
        %v440 = vpop.permute.xlu0 %439
        %441 = vrot.lane.b32.xlu0 %v423, 64
        %v442 = vpop.permute.xlu0 %441
        %vm443 = vcmask 64512
        %v444 = vsel %vm443, %v417, 0
        %v446 = vsel %vm443, %v423, 0
        %v448 = vsel %vm443, %v440, 0
        %v450 = vsel %vm443, %v442, 0
        %452 = vmatprep.subr.mxu0 0.0
        %453 = vmatpush1.xpose.msra.mxu0 %v448
        %454 = vmatprep.subr.mxu0 0.0
        %455 = vmatpush1.xpose.msra.mxu0 %v450
        %456 = vmatprep.subr.mxu0 0.0
        %457 = vmatpush1.xpose.msra.mxu0 0.0
        %458 = vmatprep.subr.mxu0 0.0
        %459 = vmatpush1.xpose.msra.mxu0 0.0
        %460 = vmatprep.subr.mxu0 0.0
        %461 = vmatpush1.xpose.msra.mxu0 0.0
        %462 = vmatprep.subr.mxu0 0.0
        %463 = vmatpush1.xpose.msra.mxu0 0.0
        %464 = vmatprep.subr.mxu0 0.0
        %465 = vmatpush1.xpose.msra.mxu0 0.0
        %466 = vmatprep.subr.mxu0 0.0
        %467 = vmatpush1.xpose.msra.mxu0 0.0
        %468 = vmatprep.subr.mxu0 0.0
        %469 = vmatpush1.xpose.msra.mxu0 0.0
        %470 = vmatprep.subr.mxu0 0.0
        %471 = vmatpush1.xpose.msra.mxu0 0.0
        %472 = vmatprep.subr.mxu0 0.0
        %473 = vmatpush1.xpose.msra.mxu0 0.0
        %474 = vmatprep.subr.mxu0 0.0
        %475 = vmatpush1.xpose.msra.mxu0 0.0
        %476 = vmatprep.subr.mxu0 0.0
        %477 = vmatpush1.xpose.msra.mxu0 0.0
        %478 = vmatprep.subr.mxu0 0.0
        %479 = vmatpush1.xpose.msra.mxu0 0.0
        %480 = vmatprep.subr.mxu0 0.0
        %481 = vmatpush1.xpose.msra.mxu0 0.0
        %482 = vmatprep.subr.mxu0 0.0
        %483 = vmatpush1.xpose.msra.mxu0 0.0
        %484 = vmatprep.subr.mxu0 0.0
        %485 = vmatpush1.xpose.msra.mxu0 0.0
        %486 = vmatprep.subr.mxu0 0.0
        %487 = vmatpush1.xpose.msra.mxu0 0.0
        %488 = vmatprep.subr.mxu0 0.0
        %489 = vmatpush1.xpose.msra.mxu0 0.0
        %490 = vmatprep.subr.mxu0 0.0
        %491 = vmatpush1.xpose.msra.mxu0 0.0
        %492 = vmatprep.subr.mxu0 0.0
        %493 = vmatpush1.xpose.msra.mxu0 0.0
        %494 = vmatprep.subr.mxu0 0.0
        %495 = vmatpush1.xpose.msra.mxu0 0.0
        %496 = vmatprep.subr.mxu0 0.0
        %497 = vmatpush1.xpose.msra.mxu0 0.0
        %498 = vmatprep.subr.mxu0 0.0
        %499 = vmatpush1.xpose.msra.mxu0 0.0
        %500 = vmatprep.subr.mxu0 0.0
        %501 = vmatpush1.xpose.msra.mxu0 0.0
        %502 = vmatprep.subr.mxu0 0.0
        %503 = vmatpush1.xpose.msra.mxu0 0.0
        %504 = vmatprep.subr.mxu0 0.0
        %505 = vmatpush1.xpose.msra.mxu0 0.0
        %506 = vmatprep.subr.mxu0 0.0
        %507 = vmatpush1.xpose.msra.mxu0 0.0
        %508 = vmatprep.subr.mxu0 0.0
        %509 = vmatpush1.xpose.msra.mxu0 0.0
        %510 = vmatprep.subr.mxu0 0.0
        %511 = vmatpush1.xpose.msra.mxu0 0.0
        %512 = vmatprep.subr.mxu0 0.0
        %513 = vmatpush1.xpose.msra.mxu0 0.0
        %514 = vmatprep.subr.mxu0 0.0
        %515 = vmatpush1.xpose.msra.mxu0 0.0
        %516 = vmatprep.mubr.f32.mxu0 0.0
        %517 = vmatmul.mubr.f32.gmra.mrb[0].mxu0 %v444
        %v518 = vpop.f32.mrb[0].mxu0
        %v519 = vadd.f32 0.0, %v518
        %v520 = vpop.f32.mrb[0].mxu0
        %521 = vmatprep.mubr.f32.mxu0 0.0
        %522 = vmatmul.mubr.f32.gmra.mrb[0].mxu0 %v446
        %v523 = vpop.f32.mrb[0].mxu0
        %v524 = vadd.f32 0.0, %v523
        %v525 = vpop.f32.mrb[0].mxu0
        %526 = vdwg.mxu0
        %v527 = vmul.f32 %v519, 0.35355338
        %v528 = vmul.f32 %v524, 0.35355338
        %vm529 = vcmp.gt.f32.partialorder %v427, 0.5
        %v530 = vsel %vm529, 1, 0
        %v531 = vlaneseq
        %v532 = vshrl.u32 %v531, 7
        %v533 = vsub.s32 0, %v532
        %v534 = vrot.slane %v530, %v533
        %vm535 = vcmp.eq.s32.totalorder %v534, 1
        %v536 = vsel %vm535, -65504.0, %v527
        %v537 = vsel %vm535, -65504.0, %v528
        %vm538 = vcmask 130048
        %v539 = vsel %vm538, %v536, -inf
        %540 = vmax.xlane.f32.xlu0 %v539
        %v541 = vpop.xlane.xlu0 %540
        %v542 = vsel %vm538, %v537, -inf
        %543 = vmax.xlane.f32.xlu0 %v542
        %v544 = vpop.xlane.xlu0 %543
        %v545 = vsub.f32 %v536, %v541
        %v546 = vsub.f32 %v537, %v544
        %v547 = vmul.f32 %v545, 1.442695
        %v548 = vpow.pop %v547
        %v549 = vmul.f32 %v546, 1.442695
        %v550 = vpow.pop %v549
        %v551 = vsel %vm538, %v548, 0.0
        %552 = vadd.xlane.f32.xlu0 %v551
        %v553 = vpop.xlane.xlu0 %552
        %v554 = vsel %vm538, %v550, 0.0
        %555 = vadd.xlane.f32.xlu0 %v554
        %v556 = vpop.xlane.xlu0 %555
        %v557 = vrcp.pop %v553
        %v558 = vrcp.pop %v556
        %v559 = vmul.f32 %v548, %v557
        %v560 = vmul.f32 %v550, %v558
        %v562 = vsel %vm538, %v559, 0
        %v565 = vsel %vm538, %v560, 0
        %567 = vmatprep.subr.mxu0 0.0
        %568 = vmatpush1.msra.mxu0 %v419
        %569 = vmatprep.subr.mxu0 0.0
        %570 = vmatpush1.msra.mxu0 %v425
        %571 = vmatprep.subr.mxu0 0.0
        %572 = vmatpush1.msra.mxu0 0.0
        %573 = vmatprep.subr.mxu0 0.0
        %574 = vmatpush1.msra.mxu0 0.0
        %575 = vmatprep.subr.mxu0 0.0
        %576 = vmatpush1.msra.mxu0 0.0
        %577 = vmatprep.subr.mxu0 0.0
        %578 = vmatpush1.msra.mxu0 0.0
        %579 = vmatprep.subr.mxu0 0.0
        %580 = vmatpush1.msra.mxu0 0.0
        %581 = vmatprep.subr.mxu0 0.0
        %582 = vmatpush1.msra.mxu0 0.0
        %583 = vmatprep.subr.mxu0 0.0
        %584 = vmatpush1.msra.mxu0 0.0
        %585 = vmatprep.subr.mxu0 0.0
        %586 = vmatpush1.msra.mxu0 0.0
        %587 = vmatprep.subr.mxu0 0.0
        %588 = vmatpush1.msra.mxu0 0.0
        %589 = vmatprep.subr.mxu0 0.0
        %590 = vmatpush1.msra.mxu0 0.0
        %591 = vmatprep.subr.mxu0 0.0
        %592 = vmatpush1.msra.mxu0 0.0
        %593 = vmatprep.subr.mxu0 0.0
        %594 = vmatpush1.msra.mxu0 0.0
        %595 = vmatprep.subr.mxu0 0.0
        %596 = vmatpush1.msra.mxu0 0.0
        %597 = vmatprep.subr.mxu0 0.0
        %598 = vmatpush1.msra.mxu0 0.0
        %599 = vmatprep.subr.mxu0 0.0
        %600 = vmatpush1.msra.mxu0 0.0
        %601 = vmatprep.subr.mxu0 0.0
        %602 = vmatpush1.msra.mxu0 0.0
        %603 = vmatprep.subr.mxu0 0.0
        %604 = vmatpush1.msra.mxu0 0.0
        %605 = vmatprep.subr.mxu0 0.0
        %606 = vmatpush1.msra.mxu0 0.0
        %607 = vmatprep.subr.mxu0 0.0
        %608 = vmatpush1.msra.mxu0 0.0
        %609 = vmatprep.subr.mxu0 0.0
        %610 = vmatpush1.msra.mxu0 0.0
        %611 = vmatprep.subr.mxu0 0.0
        %612 = vmatpush1.msra.mxu0 0.0
        %613 = vmatprep.subr.mxu0 0.0
        %614 = vmatpush1.msra.mxu0 0.0
        %615 = vmatprep.subr.mxu0 0.0
        %616 = vmatpush1.msra.mxu0 0.0
        %617 = vmatprep.subr.mxu0 0.0
        %618 = vmatpush1.msra.mxu0 0.0
        %619 = vmatprep.subr.mxu0 0.0
        %620 = vmatpush1.msra.mxu0 0.0
        %621 = vmatprep.subr.mxu0 0.0
        %622 = vmatpush1.msra.mxu0 0.0
        %623 = vmatprep.subr.mxu0 0.0
        %624 = vmatpush1.msra.mxu0 0.0
        %625 = vmatprep.subr.mxu0 0.0
        %626 = vmatpush1.msra.mxu0 0.0
        %627 = vmatprep.subr.mxu0 0.0
        %628 = vmatpush1.msra.mxu0 0.0
        %629 = vmatprep.subr.mxu0 0.0
        %630 = vmatpush1.msra.mxu0 0.0
        %631 = vmatprep.mubr.f32.mxu0 0.0
        %632 = vmatmul.mubr.f32.gmra.mrb[0].mxu0 %v562
        %v633 = vpop.f32.mrb[0].mxu0
        %v634 = vadd.f32 0.0, %v633
        %v635 = vpop.f32.mrb[0].mxu0
        %636 = vmatprep.mubr.f32.mxu0 0.0
        %637 = vmatmul.mubr.f32.gmra.mrb[0].mxu0 %v565
        %v638 = vpop.f32.mrb[0].mxu0
        %v639 = vadd.f32 0.0, %v638
        %v640 = vpop.f32.mrb[0].mxu0
        %641 = vdwg.mxu0
        %642 = vrot.lane.b32.xlu0 %v417, 120
        %v643 = vpop.permute.xlu0 %642
        %644 = vrot.lane.b32.xlu0 %v423, 120
        %v645 = vpop.permute.xlu0 %644
        %646 = vrot.lane.b32.xlu0 %v417, 56
        %v647 = vpop.permute.xlu0 %646
        %648 = vrot.lane.b32.xlu0 %v423, 56
        %v649 = vpop.permute.xlu0 %648
        %v650 = vsel %vm443, %v643, 0
        %v652 = vsel %vm443, %v645, 0
        %v654 = vsel %vm443, %v647, 0
        %v656 = vsel %vm443, %v649, 0
        %658 = vmatprep.subr.mxu0 0.0
        %659 = vmatpush1.xpose.msra.mxu0 %v654
        %660 = vmatprep.subr.mxu0 0.0
        %661 = vmatpush1.xpose.msra.mxu0 %v656
        %662 = vmatprep.subr.mxu0 0.0
        %663 = vmatpush1.xpose.msra.mxu0 0.0
        %664 = vmatprep.subr.mxu0 0.0
        %665 = vmatpush1.xpose.msra.mxu0 0.0
        %666 = vmatprep.subr.mxu0 0.0
        %667 = vmatpush1.xpose.msra.mxu0 0.0
        %668 = vmatprep.subr.mxu0 0.0
        %669 = vmatpush1.xpose.msra.mxu0 0.0
        %670 = vmatprep.subr.mxu0 0.0
        %671 = vmatpush1.xpose.msra.mxu0 0.0
        %672 = vmatprep.subr.mxu0 0.0
        %673 = vmatpush1.xpose.msra.mxu0 0.0
        %674 = vmatprep.subr.mxu0 0.0
        %675 = vmatpush1.xpose.msra.mxu0 0.0
        %676 = vmatprep.subr.mxu0 0.0
        %677 = vmatpush1.xpose.msra.mxu0 0.0
        %678 = vmatprep.subr.mxu0 0.0
        %679 = vmatpush1.xpose.msra.mxu0 0.0
        %680 = vmatprep.subr.mxu0 0.0
        %681 = vmatpush1.xpose.msra.mxu0 0.0
        %682 = vmatprep.subr.mxu0 0.0
        %683 = vmatpush1.xpose.msra.mxu0 0.0
        %684 = vmatprep.subr.mxu0 0.0
        %685 = vmatpush1.xpose.msra.mxu0 0.0
        %686 = vmatprep.subr.mxu0 0.0
        %687 = vmatpush1.xpose.msra.mxu0 0.0
        %688 = vmatprep.subr.mxu0 0.0
        %689 = vmatpush1.xpose.msra.mxu0 0.0
        %690 = vmatprep.subr.mxu0 0.0
        %691 = vmatpush1.xpose.msra.mxu0 0.0
        %692 = vmatprep.subr.mxu0 0.0
        %693 = vmatpush1.xpose.msra.mxu0 0.0
        %694 = vmatprep.subr.mxu0 0.0
        %695 = vmatpush1.xpose.msra.mxu0 0.0
        %696 = vmatprep.subr.mxu0 0.0
        %697 = vmatpush1.xpose.msra.mxu0 0.0
        %698 = vmatprep.subr.mxu0 0.0
        %699 = vmatpush1.xpose.msra.mxu0 0.0
        %700 = vmatprep.subr.mxu0 0.0
        %701 = vmatpush1.xpose.msra.mxu0 0.0
        %702 = vmatprep.subr.mxu0 0.0
        %703 = vmatpush1.xpose.msra.mxu0 0.0
        %704 = vmatprep.subr.mxu0 0.0
        %705 = vmatpush1.xpose.msra.mxu0 0.0
        %706 = vmatprep.subr.mxu0 0.0
        %707 = vmatpush1.xpose.msra.mxu0 0.0
        %708 = vmatprep.subr.mxu0 0.0
        %709 = vmatpush1.xpose.msra.mxu0 0.0
        %710 = vmatprep.subr.mxu0 0.0
        %711 = vmatpush1.xpose.msra.mxu0 0.0
        %712 = vmatprep.subr.mxu0 0.0
        %713 = vmatpush1.xpose.msra.mxu0 0.0
        %714 = vmatprep.subr.mxu0 0.0
        %715 = vmatpush1.xpose.msra.mxu0 0.0
        %716 = vmatprep.subr.mxu0 0.0
        %717 = vmatpush1.xpose.msra.mxu0 0.0
        %718 = vmatprep.subr.mxu0 0.0
        %719 = vmatpush1.xpose.msra.mxu0 0.0
        %720 = vmatprep.subr.mxu0 0.0
        %721 = vmatpush1.xpose.msra.mxu0 0.0
        %722 = vmatprep.mubr.f32.mxu0 0.0
        %723 = vmatmul.mubr.f32.gmra.mrb[0].mxu0 %v650
        %v724 = vpop.f32.mrb[0].mxu0
        %v725 = vadd.f32 0.0, %v724
        %v726 = vpop.f32.mrb[0].mxu0
        %727 = vmatprep.mubr.f32.mxu0 0.0
        %728 = vmatmul.mubr.f32.gmra.mrb[0].mxu0 %v652
        %v729 = vpop.f32.mrb[0].mxu0
        %v730 = vadd.f32 0.0, %v729
        %v731 = vpop.f32.mrb[0].mxu0
        %732 = vdwg.mxu0
        %v733 = vmul.f32 %v725, 0.35355338
        %v734 = vmul.f32 %v730, 0.35355338
        %v735 = vsel %vm535, -65504.0, %v733
        %v736 = vsel %vm535, -65504.0, %v734
        %v737 = vsel %vm538, %v735, -inf
        %738 = vmax.xlane.f32.xlu0 %v737
        %v739 = vpop.xlane.xlu0 %738
        %v740 = vsel %vm538, %v736, -inf
        %741 = vmax.xlane.f32.xlu0 %v740
        %v742 = vpop.xlane.xlu0 %741
        %v743 = vsub.f32 %v735, %v739
        %v744 = vsub.f32 %v736, %v742
        %v745 = vmul.f32 %v743, 1.442695
        %v746 = vpow.pop %v745
        %v747 = vmul.f32 %v744, 1.442695
        %v748 = vpow.pop %v747
        %v749 = vsel %vm538, %v746, 0.0
        %750 = vadd.xlane.f32.xlu0 %v749
        %v751 = vpop.xlane.xlu0 %750
        %v752 = vsel %vm538, %v748, 0.0
        %753 = vadd.xlane.f32.xlu0 %v752
        %v754 = vpop.xlane.xlu0 %753
        %v755 = vrcp.pop %v751
        %v756 = vrcp.pop %v754
        %v757 = vmul.f32 %v746, %v755
        %v758 = vmul.f32 %v748, %v756
        %761 = vrot.lane.b32.xlu0 %v419, 120
        %v762 = vpop.permute.xlu0 %761
        %763 = vrot.lane.b32.xlu0 %v425, 120
        %v764 = vpop.permute.xlu0 %763
        %v768 = vsel %vm538, %v757, 0
        %v771 = vsel %vm538, %v758, 0
        %773 = vmatprep.subr.mxu0 0.0
        %774 = vmatpush1.msra.mxu0 %v762
        %775 = vmatprep.subr.mxu0 0.0
        %776 = vmatpush1.msra.mxu0 %v764
        %777 = vmatprep.subr.mxu0 0.0
        %778 = vmatpush1.msra.mxu0 0.0
        %779 = vmatprep.subr.mxu0 0.0
        %780 = vmatpush1.msra.mxu0 0.0
        %781 = vmatprep.subr.mxu0 0.0
        %782 = vmatpush1.msra.mxu0 0.0
        %783 = vmatprep.subr.mxu0 0.0
        %784 = vmatpush1.msra.mxu0 0.0
        %785 = vmatprep.subr.mxu0 0.0
        %786 = vmatpush1.msra.mxu0 0.0
        %787 = vmatprep.subr.mxu0 0.0
        %788 = vmatpush1.msra.mxu0 0.0
        %789 = vmatprep.subr.mxu0 0.0
        %790 = vmatpush1.msra.mxu0 0.0
        %791 = vmatprep.subr.mxu0 0.0
        %792 = vmatpush1.msra.mxu0 0.0
        %793 = vmatprep.subr.mxu0 0.0
        %794 = vmatpush1.msra.mxu0 0.0
        %795 = vmatprep.subr.mxu0 0.0
        %796 = vmatpush1.msra.mxu0 0.0
        %797 = vmatprep.subr.mxu0 0.0
        %798 = vmatpush1.msra.mxu0 0.0
        %799 = vmatprep.subr.mxu0 0.0
        %800 = vmatpush1.msra.mxu0 0.0
        %801 = vmatprep.subr.mxu0 0.0
        %802 = vmatpush1.msra.mxu0 0.0
        %803 = vmatprep.subr.mxu0 0.0
        %804 = vmatpush1.msra.mxu0 0.0
        %805 = vmatprep.subr.mxu0 0.0
        %806 = vmatpush1.msra.mxu0 0.0
        %807 = vmatprep.subr.mxu0 0.0
        %808 = vmatpush1.msra.mxu0 0.0
        %809 = vmatprep.subr.mxu0 0.0
        %810 = vmatpush1.msra.mxu0 0.0
        %811 = vmatprep.subr.mxu0 0.0
        %812 = vmatpush1.msra.mxu0 0.0
        %813 = vmatprep.subr.mxu0 0.0
        %814 = vmatpush1.msra.mxu0 0.0
        %815 = vmatprep.subr.mxu0 0.0
        %816 = vmatpush1.msra.mxu0 0.0
        %817 = vmatprep.subr.mxu0 0.0
        %818 = vmatpush1.msra.mxu0 0.0
        %819 = vmatprep.subr.mxu0 0.0
        %820 = vmatpush1.msra.mxu0 0.0
        %821 = vmatprep.subr.mxu0 0.0
        %822 = vmatpush1.msra.mxu0 0.0
        %823 = vmatprep.subr.mxu0 0.0
        %824 = vmatpush1.msra.mxu0 0.0
        %825 = vmatprep.subr.mxu0 0.0
        %826 = vmatpush1.msra.mxu0 0.0
        %827 = vmatprep.subr.mxu0 0.0
        %828 = vmatpush1.msra.mxu0 0.0
        %829 = vmatprep.subr.mxu0 0.0
        %830 = vmatpush1.msra.mxu0 0.0
        %831 = vmatprep.subr.mxu0 0.0
        %832 = vmatpush1.msra.mxu0 0.0
        %833 = vmatprep.subr.mxu0 0.0
        %834 = vmatpush1.msra.mxu0 0.0
        %835 = vmatprep.subr.mxu0 0.0
        %836 = vmatpush1.msra.mxu0 0.0
        %837 = vmatprep.mubr.f32.mxu0 0.0
        %838 = vmatmul.mubr.f32.gmra.mrb[0].mxu0 %v768
        %v839 = vpop.f32.mrb[0].mxu0
        %v840 = vadd.f32 0.0, %v839
        %v841 = vpop.f32.mrb[0].mxu0
        %842 = vmatprep.mubr.f32.mxu0 0.0
        %843 = vmatmul.mubr.f32.gmra.mrb[0].mxu0 %v771
        %v844 = vpop.f32.mrb[0].mxu0
        %v845 = vadd.f32 0.0, %v844
        %v846 = vpop.f32.mrb[0].mxu0
        %847 = vdwg.mxu0
        %848 = vrot.lane.b32.xlu0 %v417, 112
        %v849 = vpop.permute.xlu0 %848
        %850 = vrot.lane.b32.xlu0 %v423, 112
        %v851 = vpop.permute.xlu0 %850
        %852 = vrot.lane.b32.xlu0 %v417, 48
        %v853 = vpop.permute.xlu0 %852
        %854 = vrot.lane.b32.xlu0 %v423, 48
        %v855 = vpop.permute.xlu0 %854
        %v856 = vsel %vm443, %v849, 0
        %v858 = vsel %vm443, %v851, 0
        %v860 = vsel %vm443, %v853, 0
        %v862 = vsel %vm443, %v855, 0
        %864 = vmatprep.subr.mxu0 0.0
        %865 = vmatpush1.xpose.msra.mxu0 %v860
        %866 = vmatprep.subr.mxu0 0.0
        %867 = vmatpush1.xpose.msra.mxu0 %v862
        %868 = vmatprep.subr.mxu0 0.0
        %869 = vmatpush1.xpose.msra.mxu0 0.0
        %870 = vmatprep.subr.mxu0 0.0
        %871 = vmatpush1.xpose.msra.mxu0 0.0
        %872 = vmatprep.subr.mxu0 0.0
        %873 = vmatpush1.xpose.msra.mxu0 0.0
        %874 = vmatprep.subr.mxu0 0.0
        %875 = vmatpush1.xpose.msra.mxu0 0.0
        %876 = vmatprep.subr.mxu0 0.0
        %877 = vmatpush1.xpose.msra.mxu0 0.0
        %878 = vmatprep.subr.mxu0 0.0
        %879 = vmatpush1.xpose.msra.mxu0 0.0
        %880 = vmatprep.subr.mxu0 0.0
        %881 = vmatpush1.xpose.msra.mxu0 0.0
        %882 = vmatprep.subr.mxu0 0.0
        %883 = vmatpush1.xpose.msra.mxu0 0.0
        %884 = vmatprep.subr.mxu0 0.0
        %885 = vmatpush1.xpose.msra.mxu0 0.0
        %886 = vmatprep.subr.mxu0 0.0
        %887 = vmatpush1.xpose.msra.mxu0 0.0
        %888 = vmatprep.subr.mxu0 0.0
        %889 = vmatpush1.xpose.msra.mxu0 0.0
        %890 = vmatprep.subr.mxu0 0.0
        %891 = vmatpush1.xpose.msra.mxu0 0.0
        %892 = vmatprep.subr.mxu0 0.0
        %893 = vmatpush1.xpose.msra.mxu0 0.0
        %894 = vmatprep.subr.mxu0 0.0
        %895 = vmatpush1.xpose.msra.mxu0 0.0
        %896 = vmatprep.subr.mxu0 0.0
        %897 = vmatpush1.xpose.msra.mxu0 0.0
        %898 = vmatprep.subr.mxu0 0.0
        %899 = vmatpush1.xpose.msra.mxu0 0.0
        %900 = vmatprep.subr.mxu0 0.0
        %901 = vmatpush1.xpose.msra.mxu0 0.0
        %902 = vmatprep.subr.mxu0 0.0
        %903 = vmatpush1.xpose.msra.mxu0 0.0
        %904 = vmatprep.subr.mxu0 0.0
        %905 = vmatpush1.xpose.msra.mxu0 0.0
        %906 = vmatprep.subr.mxu0 0.0
        %907 = vmatpush1.xpose.msra.mxu0 0.0
        %908 = vmatprep.subr.mxu0 0.0
        %909 = vmatpush1.xpose.msra.mxu0 0.0
        %910 = vmatprep.subr.mxu0 0.0
        %911 = vmatpush1.xpose.msra.mxu0 0.0
        %912 = vmatprep.subr.mxu0 0.0
        %913 = vmatpush1.xpose.msra.mxu0 0.0
        %914 = vmatprep.subr.mxu0 0.0
        %915 = vmatpush1.xpose.msra.mxu0 0.0
        %916 = vmatprep.subr.mxu0 0.0
        %917 = vmatpush1.xpose.msra.mxu0 0.0
        %918 = vmatprep.subr.mxu0 0.0
        %919 = vmatpush1.xpose.msra.mxu0 0.0
        %920 = vmatprep.subr.mxu0 0.0
        %921 = vmatpush1.xpose.msra.mxu0 0.0
        %922 = vmatprep.subr.mxu0 0.0
        %923 = vmatpush1.xpose.msra.mxu0 0.0
        %924 = vmatprep.subr.mxu0 0.0
        %925 = vmatpush1.xpose.msra.mxu0 0.0
        %926 = vmatprep.subr.mxu0 0.0
        %927 = vmatpush1.xpose.msra.mxu0 0.0
        %928 = vmatprep.mubr.f32.mxu0 0.0
        %929 = vmatmul.mubr.f32.gmra.mrb[0].mxu0 %v856
        %v930 = vpop.f32.mrb[0].mxu0
        %v931 = vadd.f32 0.0, %v930
        %v932 = vpop.f32.mrb[0].mxu0
        %933 = vmatprep.mubr.f32.mxu0 0.0
        %934 = vmatmul.mubr.f32.gmra.mrb[0].mxu0 %v858
        %v935 = vpop.f32.mrb[0].mxu0
        %v936 = vadd.f32 0.0, %v935
        %v937 = vpop.f32.mrb[0].mxu0
        %938 = vdwg.mxu0
        %v939 = vmul.f32 %v931, 0.35355338
        %v940 = vmul.f32 %v936, 0.35355338
        %v941 = vsel %vm535, -65504.0, %v939
        %v942 = vsel %vm535, -65504.0, %v940
        %v943 = vsel %vm538, %v941, -inf
        %944 = vmax.xlane.f32.xlu0 %v943
        %v945 = vpop.xlane.xlu0 %944
        %v946 = vsel %vm538, %v942, -inf
        %947 = vmax.xlane.f32.xlu0 %v946
        %v948 = vpop.xlane.xlu0 %947
        %v949 = vsub.f32 %v941, %v945
        %v950 = vsub.f32 %v942, %v948
        %v951 = vmul.f32 %v949, 1.442695
        %v952 = vpow.pop %v951
        %v953 = vmul.f32 %v950, 1.442695
        %v954 = vpow.pop %v953
        %v955 = vsel %vm538, %v952, 0.0
        %956 = vadd.xlane.f32.xlu0 %v955
        %v957 = vpop.xlane.xlu0 %956
        %v958 = vsel %vm538, %v954, 0.0
        %959 = vadd.xlane.f32.xlu0 %v958
        %v960 = vpop.xlane.xlu0 %959
        %v961 = vrcp.pop %v957
        %v962 = vrcp.pop %v960
        %v963 = vmul.f32 %v952, %v961
        %v964 = vmul.f32 %v954, %v962
        %965 = vrot.lane.b32.xlu0 %v419, 112
        %v966 = vpop.permute.xlu0 %965
        %967 = vrot.lane.b32.xlu0 %v425, 112
        %v968 = vpop.permute.xlu0 %967
        %v972 = vsel %vm538, %v963, 0
        %v975 = vsel %vm538, %v964, 0
        %977 = vmatprep.subr.mxu0 0.0
        %978 = vmatpush1.msra.mxu0 %v966
        %979 = vmatprep.subr.mxu0 0.0
        %980 = vmatpush1.msra.mxu0 %v968
        %981 = vmatprep.subr.mxu0 0.0
        %982 = vmatpush1.msra.mxu0 0.0
        %983 = vmatprep.subr.mxu0 0.0
        %984 = vmatpush1.msra.mxu0 0.0
        %985 = vmatprep.subr.mxu0 0.0
        %986 = vmatpush1.msra.mxu0 0.0
        %987 = vmatprep.subr.mxu0 0.0
        %988 = vmatpush1.msra.mxu0 0.0
        %989 = vmatprep.subr.mxu0 0.0
        %990 = vmatpush1.msra.mxu0 0.0
        %991 = vmatprep.subr.mxu0 0.0
        %992 = vmatpush1.msra.mxu0 0.0
        %993 = vmatprep.subr.mxu0 0.0
        %994 = vmatpush1.msra.mxu0 0.0
        %995 = vmatprep.subr.mxu0 0.0
        %996 = vmatpush1.msra.mxu0 0.0
        %997 = vmatprep.subr.mxu0 0.0
        %998 = vmatpush1.msra.mxu0 0.0
        %999 = vmatprep.subr.mxu0 0.0
        %1000 = vmatpush1.msra.mxu0 0.0
        %1001 = vmatprep.subr.mxu0 0.0
        %1002 = vmatpush1.msra.mxu0 0.0
        %1003 = vmatprep.subr.mxu0 0.0
        %1004 = vmatpush1.msra.mxu0 0.0
        %1005 = vmatprep.subr.mxu0 0.0
        %1006 = vmatpush1.msra.mxu0 0.0
        %1007 = vmatprep.subr.mxu0 0.0
        %1008 = vmatpush1.msra.mxu0 0.0
        %1009 = vmatprep.subr.mxu0 0.0
        %1010 = vmatpush1.msra.mxu0 0.0
        %1011 = vmatprep.subr.mxu0 0.0
        %1012 = vmatpush1.msra.mxu0 0.0
        %1013 = vmatprep.subr.mxu0 0.0
        %1014 = vmatpush1.msra.mxu0 0.0
        %1015 = vmatprep.subr.mxu0 0.0
        %1016 = vmatpush1.msra.mxu0 0.0
        %1017 = vmatprep.subr.mxu0 0.0
        %1018 = vmatpush1.msra.mxu0 0.0
        %1019 = vmatprep.subr.mxu0 0.0
        %1020 = vmatpush1.msra.mxu0 0.0
        %1021 = vmatprep.subr.mxu0 0.0
        %1022 = vmatpush1.msra.mxu0 0.0
        %1023 = vmatprep.subr.mxu0 0.0
        %1024 = vmatpush1.msra.mxu0 0.0
        %1025 = vmatprep.subr.mxu0 0.0
        %1026 = vmatpush1.msra.mxu0 0.0
        %1027 = vmatprep.subr.mxu0 0.0
        %1028 = vmatpush1.msra.mxu0 0.0
        %1029 = vmatprep.subr.mxu0 0.0
        %1030 = vmatpush1.msra.mxu0 0.0
        %1031 = vmatprep.subr.mxu0 0.0
        %1032 = vmatpush1.msra.mxu0 0.0
        %1033 = vmatprep.subr.mxu0 0.0
        %1034 = vmatpush1.msra.mxu0 0.0
        %1035 = vmatprep.subr.mxu0 0.0
        %1036 = vmatpush1.msra.mxu0 0.0
        %1037 = vmatprep.subr.mxu0 0.0
        %1038 = vmatpush1.msra.mxu0 0.0
        %1039 = vmatprep.subr.mxu0 0.0
        %1040 = vmatpush1.msra.mxu0 0.0
        %1041 = vmatprep.mubr.f32.mxu0 0.0
        %1042 = vmatmul.mubr.f32.gmra.mrb[0].mxu0 %v972
        %v1043 = vpop.f32.mrb[0].mxu0
        %v1044 = vadd.f32 0.0, %v1043
        %v1045 = vpop.f32.mrb[0].mxu0
        %1046 = vmatprep.mubr.f32.mxu0 0.0
        %1047 = vmatmul.mubr.f32.gmra.mrb[0].mxu0 %v975
        %v1048 = vpop.f32.mrb[0].mxu0
        %v1049 = vadd.f32 0.0, %v1048
        %v1050 = vpop.f32.mrb[0].mxu0
        %1051 = vdwg.mxu0
        %1052 = vrot.lane.b32.xlu0 %v417, 104
        %v1053 = vpop.permute.xlu0 %1052
        %1054 = vrot.lane.b32.xlu0 %v423, 104
        %v1055 = vpop.permute.xlu0 %1054
        %1056 = vrot.lane.b32.xlu0 %v417, 40
        %v1057 = vpop.permute.xlu0 %1056
        %1058 = vrot.lane.b32.xlu0 %v423, 40
        %v1059 = vpop.permute.xlu0 %1058
        %v1060 = vsel %vm443, %v1053, 0
        %v1062 = vsel %vm443, %v1055, 0
        %v1064 = vsel %vm443, %v1057, 0
        %v1066 = vsel %vm443, %v1059, 0
        %1068 = vmatprep.subr.mxu0 0.0
        %1069 = vmatpush1.xpose.msra.mxu0 %v1064
        %1070 = vmatprep.subr.mxu0 0.0
        %1071 = vmatpush1.xpose.msra.mxu0 %v1066
        %1072 = vmatprep.subr.mxu0 0.0
        %1073 = vmatpush1.xpose.msra.mxu0 0.0
        %1074 = vmatprep.subr.mxu0 0.0
        %1075 = vmatpush1.xpose.msra.mxu0 0.0
        %1076 = vmatprep.subr.mxu0 0.0
        %1077 = vmatpush1.xpose.msra.mxu0 0.0
        %1078 = vmatprep.subr.mxu0 0.0
        %1079 = vmatpush1.xpose.msra.mxu0 0.0
        %1080 = vmatprep.subr.mxu0 0.0
        %1081 = vmatpush1.xpose.msra.mxu0 0.0
        %1082 = vmatprep.subr.mxu0 0.0
        %1083 = vmatpush1.xpose.msra.mxu0 0.0
        %1084 = vmatprep.subr.mxu0 0.0
        %1085 = vmatpush1.xpose.msra.mxu0 0.0
        %1086 = vmatprep.subr.mxu0 0.0
        %1087 = vmatpush1.xpose.msra.mxu0 0.0
        %1088 = vmatprep.subr.mxu0 0.0
        %1089 = vmatpush1.xpose.msra.mxu0 0.0
        %1090 = vmatprep.subr.mxu0 0.0
        %1091 = vmatpush1.xpose.msra.mxu0 0.0
        %1092 = vmatprep.subr.mxu0 0.0
        %1093 = vmatpush1.xpose.msra.mxu0 0.0
        %1094 = vmatprep.subr.mxu0 0.0
        %1095 = vmatpush1.xpose.msra.mxu0 0.0
        %1096 = vmatprep.subr.mxu0 0.0
        %1097 = vmatpush1.xpose.msra.mxu0 0.0
        %1098 = vmatprep.subr.mxu0 0.0
        %1099 = vmatpush1.xpose.msra.mxu0 0.0
        %1100 = vmatprep.subr.mxu0 0.0
        %1101 = vmatpush1.xpose.msra.mxu0 0.0
        %1102 = vmatprep.subr.mxu0 0.0
        %1103 = vmatpush1.xpose.msra.mxu0 0.0
        %1104 = vmatprep.subr.mxu0 0.0
        %1105 = vmatpush1.xpose.msra.mxu0 0.0
        %1106 = vmatprep.subr.mxu0 0.0
        %1107 = vmatpush1.xpose.msra.mxu0 0.0
        %1108 = vmatprep.subr.mxu0 0.0
        %1109 = vmatpush1.xpose.msra.mxu0 0.0
        %1110 = vmatprep.subr.mxu0 0.0
        %1111 = vmatpush1.xpose.msra.mxu0 0.0
        %1112 = vmatprep.subr.mxu0 0.0
        %1113 = vmatpush1.xpose.msra.mxu0 0.0
        %1114 = vmatprep.subr.mxu0 0.0
        %1115 = vmatpush1.xpose.msra.mxu0 0.0
        %1116 = vmatprep.subr.mxu0 0.0
        %1117 = vmatpush1.xpose.msra.mxu0 0.0
        %1118 = vmatprep.subr.mxu0 0.0
        %1119 = vmatpush1.xpose.msra.mxu0 0.0
        %1120 = vmatprep.subr.mxu0 0.0
        %1121 = vmatpush1.xpose.msra.mxu0 0.0
        %1122 = vmatprep.subr.mxu0 0.0
        %1123 = vmatpush1.xpose.msra.mxu0 0.0
        %1124 = vmatprep.subr.mxu0 0.0
        %1125 = vmatpush1.xpose.msra.mxu0 0.0
        %1126 = vmatprep.subr.mxu0 0.0
        %1127 = vmatpush1.xpose.msra.mxu0 0.0
        %1128 = vmatprep.subr.mxu0 0.0
        %1129 = vmatpush1.xpose.msra.mxu0 0.0
        %1130 = vmatprep.subr.mxu0 0.0
        %1131 = vmatpush1.xpose.msra.mxu0 0.0
        %1132 = vmatprep.mubr.f32.mxu0 0.0
        %1133 = vmatmul.mubr.f32.gmra.mrb[0].mxu0 %v1060
        %v1134 = vpop.f32.mrb[0].mxu0
        %v1135 = vadd.f32 0.0, %v1134
        %v1136 = vpop.f32.mrb[0].mxu0
        %1137 = vmatprep.mubr.f32.mxu0 0.0
        %1138 = vmatmul.mubr.f32.gmra.mrb[0].mxu0 %v1062
        %v1139 = vpop.f32.mrb[0].mxu0
        %v1140 = vadd.f32 0.0, %v1139
        %v1141 = vpop.f32.mrb[0].mxu0
        %1142 = vdwg.mxu0
        %v1143 = vmul.f32 %v1135, 0.35355338
        %v1144 = vmul.f32 %v1140, 0.35355338
        %v1145 = vsel %vm535, -65504.0, %v1143
        %v1146 = vsel %vm535, -65504.0, %v1144
        %v1147 = vsel %vm538, %v1145, -inf
        %1148 = vmax.xlane.f32.xlu0 %v1147
        %v1149 = vpop.xlane.xlu0 %1148
        %v1150 = vsel %vm538, %v1146, -inf
        %1151 = vmax.xlane.f32.xlu0 %v1150
        %v1152 = vpop.xlane.xlu0 %1151
        %v1153 = vsub.f32 %v1145, %v1149
        %v1154 = vsub.f32 %v1146, %v1152
        %v1155 = vmul.f32 %v1153, 1.442695
        %v1156 = vpow.pop %v1155
        %v1157 = vmul.f32 %v1154, 1.442695
        %v1158 = vpow.pop %v1157
        %v1159 = vsel %vm538, %v1156, 0.0
        %1160 = vadd.xlane.f32.xlu0 %v1159
        %v1161 = vpop.xlane.xlu0 %1160
        %v1162 = vsel %vm538, %v1158, 0.0
        %1163 = vadd.xlane.f32.xlu0 %v1162
        %v1164 = vpop.xlane.xlu0 %1163
        %v1165 = vrcp.pop %v1161
        %v1166 = vrcp.pop %v1164
        %v1167 = vmul.f32 %v1156, %v1165
        %v1168 = vmul.f32 %v1158, %v1166
        %1169 = vrot.lane.b32.xlu0 %v419, 104
        %v1170 = vpop.permute.xlu0 %1169
        %1171 = vrot.lane.b32.xlu0 %v425, 104
        %v1172 = vpop.permute.xlu0 %1171
        %v1176 = vsel %vm538, %v1167, 0
        %v1179 = vsel %vm538, %v1168, 0
        %1181 = vmatprep.subr.mxu0 0.0
        %1182 = vmatpush1.msra.mxu0 %v1170
        %1183 = vmatprep.subr.mxu0 0.0
        %1184 = vmatpush1.msra.mxu0 %v1172
        %1185 = vmatprep.subr.mxu0 0.0
        %1186 = vmatpush1.msra.mxu0 0.0
        %1187 = vmatprep.subr.mxu0 0.0
        %1188 = vmatpush1.msra.mxu0 0.0
        %1189 = vmatprep.subr.mxu0 0.0
        %1190 = vmatpush1.msra.mxu0 0.0
        %1191 = vmatprep.subr.mxu0 0.0
        %1192 = vmatpush1.msra.mxu0 0.0
        %1193 = vmatprep.subr.mxu0 0.0
        %1194 = vmatpush1.msra.mxu0 0.0
        %1195 = vmatprep.subr.mxu0 0.0
        %1196 = vmatpush1.msra.mxu0 0.0
        %1197 = vmatprep.subr.mxu0 0.0
        %1198 = vmatpush1.msra.mxu0 0.0
        %1199 = vmatprep.subr.mxu0 0.0
        %1200 = vmatpush1.msra.mxu0 0.0
        %1201 = vmatprep.subr.mxu0 0.0
        %1202 = vmatpush1.msra.mxu0 0.0
        %1203 = vmatprep.subr.mxu0 0.0
        %1204 = vmatpush1.msra.mxu0 0.0
        %1205 = vmatprep.subr.mxu0 0.0
        %1206 = vmatpush1.msra.mxu0 0.0
        %1207 = vmatprep.subr.mxu0 0.0
        %1208 = vmatpush1.msra.mxu0 0.0
        %1209 = vmatprep.subr.mxu0 0.0
        %1210 = vmatpush1.msra.mxu0 0.0
        %1211 = vmatprep.subr.mxu0 0.0
        %1212 = vmatpush1.msra.mxu0 0.0
        %1213 = vmatprep.subr.mxu0 0.0
        %1214 = vmatpush1.msra.mxu0 0.0
        %1215 = vmatprep.subr.mxu0 0.0
        %1216 = vmatpush1.msra.mxu0 0.0
        %1217 = vmatprep.subr.mxu0 0.0
        %1218 = vmatpush1.msra.mxu0 0.0
        %1219 = vmatprep.subr.mxu0 0.0
        %1220 = vmatpush1.msra.mxu0 0.0
        %1221 = vmatprep.subr.mxu0 0.0
        %1222 = vmatpush1.msra.mxu0 0.0
        %1223 = vmatprep.subr.mxu0 0.0
        %1224 = vmatpush1.msra.mxu0 0.0
        %1225 = vmatprep.subr.mxu0 0.0
        %1226 = vmatpush1.msra.mxu0 0.0
        %1227 = vmatprep.subr.mxu0 0.0
        %1228 = vmatpush1.msra.mxu0 0.0
        %1229 = vmatprep.subr.mxu0 0.0
        %1230 = vmatpush1.msra.mxu0 0.0
        %1231 = vmatprep.subr.mxu0 0.0
        %1232 = vmatpush1.msra.mxu0 0.0
        %1233 = vmatprep.subr.mxu0 0.0
        %1234 = vmatpush1.msra.mxu0 0.0
        %1235 = vmatprep.subr.mxu0 0.0
        %1236 = vmatpush1.msra.mxu0 0.0
        %1237 = vmatprep.subr.mxu0 0.0
        %1238 = vmatpush1.msra.mxu0 0.0
        %1239 = vmatprep.subr.mxu0 0.0
        %1240 = vmatpush1.msra.mxu0 0.0
        %1241 = vmatprep.subr.mxu0 0.0
        %1242 = vmatpush1.msra.mxu0 0.0
        %1243 = vmatprep.subr.mxu0 0.0
        %1244 = vmatpush1.msra.mxu0 0.0
        %1245 = vmatprep.mubr.f32.mxu0 0.0
        %1246 = vmatmul.mubr.f32.gmra.mrb[0].mxu0 %v1176
        %v1247 = vpop.f32.mrb[0].mxu0
        %v1248 = vadd.f32 0.0, %v1247
        %v1249 = vpop.f32.mrb[0].mxu0
        %1250 = vmatprep.mubr.f32.mxu0 0.0
        %1251 = vmatmul.mubr.f32.gmra.mrb[0].mxu0 %v1179
        %v1252 = vpop.f32.mrb[0].mxu0
        %v1253 = vadd.f32 0.0, %v1252
        %v1254 = vpop.f32.mrb[0].mxu0
        %1255 = vdwg.mxu0
        %1256 = vrot.lane.b32.xlu0 %v417, 96
        %v1257 = vpop.permute.xlu0 %1256
        %1258 = vrot.lane.b32.xlu0 %v423, 96
        %v1259 = vpop.permute.xlu0 %1258
        %1260 = vrot.lane.b32.xlu0 %v417, 32
        %v1261 = vpop.permute.xlu0 %1260
        %1262 = vrot.lane.b32.xlu0 %v423, 32
        %v1263 = vpop.permute.xlu0 %1262
        %v1264 = vsel %vm443, %v1257, 0
        %v1266 = vsel %vm443, %v1259, 0
        %v1268 = vsel %vm443, %v1261, 0
        %v1270 = vsel %vm443, %v1263, 0
        %1272 = vmatprep.subr.mxu0 0.0
        %1273 = vmatpush1.xpose.msra.mxu0 %v1268
        %1274 = vmatprep.subr.mxu0 0.0
        %1275 = vmatpush1.xpose.msra.mxu0 %v1270
        %1276 = vmatprep.subr.mxu0 0.0
        %1277 = vmatpush1.xpose.msra.mxu0 0.0
        %1278 = vmatprep.subr.mxu0 0.0
        %1279 = vmatpush1.xpose.msra.mxu0 0.0
        %1280 = vmatprep.subr.mxu0 0.0
        %1281 = vmatpush1.xpose.msra.mxu0 0.0
        %1282 = vmatprep.subr.mxu0 0.0
        %1283 = vmatpush1.xpose.msra.mxu0 0.0
        %1284 = vmatprep.subr.mxu0 0.0
        %1285 = vmatpush1.xpose.msra.mxu0 0.0
        %1286 = vmatprep.subr.mxu0 0.0
        %1287 = vmatpush1.xpose.msra.mxu0 0.0
        %1288 = vmatprep.subr.mxu0 0.0
        %1289 = vmatpush1.xpose.msra.mxu0 0.0
        %1290 = vmatprep.subr.mxu0 0.0
        %1291 = vmatpush1.xpose.msra.mxu0 0.0
        %1292 = vmatprep.subr.mxu0 0.0
        %1293 = vmatpush1.xpose.msra.mxu0 0.0
        %1294 = vmatprep.subr.mxu0 0.0
        %1295 = vmatpush1.xpose.msra.mxu0 0.0
        %1296 = vmatprep.subr.mxu0 0.0
        %1297 = vmatpush1.xpose.msra.mxu0 0.0
        %1298 = vmatprep.subr.mxu0 0.0
        %1299 = vmatpush1.xpose.msra.mxu0 0.0
        %1300 = vmatprep.subr.mxu0 0.0
        %1301 = vmatpush1.xpose.msra.mxu0 0.0
        %1302 = vmatprep.subr.mxu0 0.0
        %1303 = vmatpush1.xpose.msra.mxu0 0.0
        %1304 = vmatprep.subr.mxu0 0.0
        %1305 = vmatpush1.xpose.msra.mxu0 0.0
        %1306 = vmatprep.subr.mxu0 0.0
        %1307 = vmatpush1.xpose.msra.mxu0 0.0
        %1308 = vmatprep.subr.mxu0 0.0
        %1309 = vmatpush1.xpose.msra.mxu0 0.0
        %1310 = vmatprep.subr.mxu0 0.0
        %1311 = vmatpush1.xpose.msra.mxu0 0.0
        %1312 = vmatprep.subr.mxu0 0.0
        %1313 = vmatpush1.xpose.msra.mxu0 0.0
        %1314 = vmatprep.subr.mxu0 0.0
        %1315 = vmatpush1.xpose.msra.mxu0 0.0
        %1316 = vmatprep.subr.mxu0 0.0
        %1317 = vmatpush1.xpose.msra.mxu0 0.0
        %1318 = vmatprep.subr.mxu0 0.0
        %1319 = vmatpush1.xpose.msra.mxu0 0.0
        %1320 = vmatprep.subr.mxu0 0.0
        %1321 = vmatpush1.xpose.msra.mxu0 0.0
        %1322 = vmatprep.subr.mxu0 0.0
        %1323 = vmatpush1.xpose.msra.mxu0 0.0
        %1324 = vmatprep.subr.mxu0 0.0
        %1325 = vmatpush1.xpose.msra.mxu0 0.0
        %1326 = vmatprep.subr.mxu0 0.0
        %1327 = vmatpush1.xpose.msra.mxu0 0.0
        %1328 = vmatprep.subr.mxu0 0.0
        %1329 = vmatpush1.xpose.msra.mxu0 0.0
        %1330 = vmatprep.subr.mxu0 0.0
        %1331 = vmatpush1.xpose.msra.mxu0 0.0
        %1332 = vmatprep.subr.mxu0 0.0
        %1333 = vmatpush1.xpose.msra.mxu0 0.0
        %1334 = vmatprep.subr.mxu0 0.0
        %1335 = vmatpush1.xpose.msra.mxu0 0.0
        %1336 = vmatprep.mubr.f32.mxu0 0.0
        %1337 = vmatmul.mubr.f32.gmra.mrb[0].mxu0 %v1264
        %v1338 = vpop.f32.mrb[0].mxu0
        %v1339 = vadd.f32 0.0, %v1338
        %v1340 = vpop.f32.mrb[0].mxu0
        %1341 = vmatprep.mubr.f32.mxu0 0.0
        %1342 = vmatmul.mubr.f32.gmra.mrb[0].mxu0 %v1266
        %v1343 = vpop.f32.mrb[0].mxu0
        %v1344 = vadd.f32 0.0, %v1343
        %v1345 = vpop.f32.mrb[0].mxu0
        %1346 = vdwg.mxu0
        %v1347 = vmul.f32 %v1339, 0.35355338
        %v1348 = vmul.f32 %v1344, 0.35355338
        %v1349 = vsel %vm535, -65504.0, %v1347
        %v1350 = vsel %vm535, -65504.0, %v1348
        %v1351 = vsel %vm538, %v1349, -inf
        %1352 = vmax.xlane.f32.xlu0 %v1351
        %v1353 = vpop.xlane.xlu0 %1352
        %v1354 = vsel %vm538, %v1350, -inf
        %1355 = vmax.xlane.f32.xlu0 %v1354
        %v1356 = vpop.xlane.xlu0 %1355
        %v1357 = vsub.f32 %v1349, %v1353
        %v1358 = vsub.f32 %v1350, %v1356
        %v1359 = vmul.f32 %v1357, 1.442695
        %v1360 = vpow.pop %v1359
        %v1361 = vmul.f32 %v1358, 1.442695
        %v1362 = vpow.pop %v1361
        %v1363 = vsel %vm538, %v1360, 0.0
        %1364 = vadd.xlane.f32.xlu0 %v1363
        %v1365 = vpop.xlane.xlu0 %1364
        %v1366 = vsel %vm538, %v1362, 0.0
        %1367 = vadd.xlane.f32.xlu0 %v1366
        %v1368 = vpop.xlane.xlu0 %1367
        %v1369 = vrcp.pop %v1365
        %v1370 = vrcp.pop %v1368
        %v1371 = vmul.f32 %v1360, %v1369
        %v1372 = vmul.f32 %v1362, %v1370
        %1373 = vrot.lane.b32.xlu0 %v419, 96
        %v1374 = vpop.permute.xlu0 %1373
        %1375 = vrot.lane.b32.xlu0 %v425, 96
        %v1376 = vpop.permute.xlu0 %1375
        %v1380 = vsel %vm538, %v1371, 0
        %v1383 = vsel %vm538, %v1372, 0
        %1385 = vmatprep.subr.mxu0 0.0
        %1386 = vmatpush1.msra.mxu0 %v1374
        %1387 = vmatprep.subr.mxu0 0.0
        %1388 = vmatpush1.msra.mxu0 %v1376
        %1389 = vmatprep.subr.mxu0 0.0
        %1390 = vmatpush1.msra.mxu0 0.0
        %1391 = vmatprep.subr.mxu0 0.0
        %1392 = vmatpush1.msra.mxu0 0.0
        %1393 = vmatprep.subr.mxu0 0.0
        %1394 = vmatpush1.msra.mxu0 0.0
        %1395 = vmatprep.subr.mxu0 0.0
        %1396 = vmatpush1.msra.mxu0 0.0
        %1397 = vmatprep.subr.mxu0 0.0
        %1398 = vmatpush1.msra.mxu0 0.0
        %1399 = vmatprep.subr.mxu0 0.0
        %1400 = vmatpush1.msra.mxu0 0.0
        %1401 = vmatprep.subr.mxu0 0.0
        %1402 = vmatpush1.msra.mxu0 0.0
        %1403 = vmatprep.subr.mxu0 0.0
        %1404 = vmatpush1.msra.mxu0 0.0
        %1405 = vmatprep.subr.mxu0 0.0
        %1406 = vmatpush1.msra.mxu0 0.0
        %1407 = vmatprep.subr.mxu0 0.0
        %1408 = vmatpush1.msra.mxu0 0.0
        %1409 = vmatprep.subr.mxu0 0.0
        %1410 = vmatpush1.msra.mxu0 0.0
        %1411 = vmatprep.subr.mxu0 0.0
        %1412 = vmatpush1.msra.mxu0 0.0
        %1413 = vmatprep.subr.mxu0 0.0
        %1414 = vmatpush1.msra.mxu0 0.0
        %1415 = vmatprep.subr.mxu0 0.0
        %1416 = vmatpush1.msra.mxu0 0.0
        %1417 = vmatprep.subr.mxu0 0.0
        %1418 = vmatpush1.msra.mxu0 0.0
        %1419 = vmatprep.subr.mxu0 0.0
        %1420 = vmatpush1.msra.mxu0 0.0
        %1421 = vmatprep.subr.mxu0 0.0
        %1422 = vmatpush1.msra.mxu0 0.0
        %1423 = vmatprep.subr.mxu0 0.0
        %1424 = vmatpush1.msra.mxu0 0.0
        %1425 = vmatprep.subr.mxu0 0.0
        %1426 = vmatpush1.msra.mxu0 0.0
        %1427 = vmatprep.subr.mxu0 0.0
        %1428 = vmatpush1.msra.mxu0 0.0
        %1429 = vmatprep.subr.mxu0 0.0
        %1430 = vmatpush1.msra.mxu0 0.0
        %1431 = vmatprep.subr.mxu0 0.0
        %1432 = vmatpush1.msra.mxu0 0.0
        %1433 = vmatprep.subr.mxu0 0.0
        %1434 = vmatpush1.msra.mxu0 0.0
        %1435 = vmatprep.subr.mxu0 0.0
        %1436 = vmatpush1.msra.mxu0 0.0
        %1437 = vmatprep.subr.mxu0 0.0
        %1438 = vmatpush1.msra.mxu0 0.0
        %1439 = vmatprep.subr.mxu0 0.0
        %1440 = vmatpush1.msra.mxu0 0.0
        %1441 = vmatprep.subr.mxu0 0.0
        %1442 = vmatpush1.msra.mxu0 0.0
        %1443 = vmatprep.subr.mxu0 0.0
        %1444 = vmatpush1.msra.mxu0 0.0
        %1445 = vmatprep.subr.mxu0 0.0
        %1446 = vmatpush1.msra.mxu0 0.0
        %1447 = vmatprep.subr.mxu0 0.0
        %1448 = vmatpush1.msra.mxu0 0.0
        %1449 = vmatprep.mubr.f32.mxu0 0.0
        %1450 = vmatmul.mubr.f32.gmra.mrb[0].mxu0 %v1380
        %v1451 = vpop.f32.mrb[0].mxu0
        %v1452 = vadd.f32 0.0, %v1451
        %v1453 = vpop.f32.mrb[0].mxu0
        %1454 = vmatprep.mubr.f32.mxu0 0.0
        %1455 = vmatmul.mubr.f32.gmra.mrb[0].mxu0 %v1383
        %v1456 = vpop.f32.mrb[0].mxu0
        %v1457 = vadd.f32 0.0, %v1456
        %v1458 = vpop.f32.mrb[0].mxu0
        %1459 = vdwg.mxu0
        %1460 = vrot.lane.b32.xlu0 %v417, 88
        %v1461 = vpop.permute.xlu0 %1460
        %1462 = vrot.lane.b32.xlu0 %v423, 88
        %v1463 = vpop.permute.xlu0 %1462
        %1464 = vrot.lane.b32.xlu0 %v417, 24
        %v1465 = vpop.permute.xlu0 %1464
        %1466 = vrot.lane.b32.xlu0 %v423, 24
        %v1467 = vpop.permute.xlu0 %1466
        %v1468 = vsel %vm443, %v1461, 0
        %v1470 = vsel %vm443, %v1463, 0
        %v1472 = vsel %vm443, %v1465, 0
        %v1474 = vsel %vm443, %v1467, 0
        %1476 = vmatprep.subr.mxu0 0.0
        %1477 = vmatpush1.xpose.msra.mxu0 %v1472
        %1478 = vmatprep.subr.mxu0 0.0
        %1479 = vmatpush1.xpose.msra.mxu0 %v1474
        %1480 = vmatprep.subr.mxu0 0.0
        %1481 = vmatpush1.xpose.msra.mxu0 0.0
        %1482 = vmatprep.subr.mxu0 0.0
        %1483 = vmatpush1.xpose.msra.mxu0 0.0
        %1484 = vmatprep.subr.mxu0 0.0
        %1485 = vmatpush1.xpose.msra.mxu0 0.0
        %1486 = vmatprep.subr.mxu0 0.0
        %1487 = vmatpush1.xpose.msra.mxu0 0.0
        %1488 = vmatprep.subr.mxu0 0.0
        %1489 = vmatpush1.xpose.msra.mxu0 0.0
        %1490 = vmatprep.subr.mxu0 0.0
        %1491 = vmatpush1.xpose.msra.mxu0 0.0
        %1492 = vmatprep.subr.mxu0 0.0
        %1493 = vmatpush1.xpose.msra.mxu0 0.0
        %1494 = vmatprep.subr.mxu0 0.0
        %1495 = vmatpush1.xpose.msra.mxu0 0.0
        %1496 = vmatprep.subr.mxu0 0.0
        %1497 = vmatpush1.xpose.msra.mxu0 0.0
        %1498 = vmatprep.subr.mxu0 0.0
        %1499 = vmatpush1.xpose.msra.mxu0 0.0
        %1500 = vmatprep.subr.mxu0 0.0
        %1501 = vmatpush1.xpose.msra.mxu0 0.0
        %1502 = vmatprep.subr.mxu0 0.0
        %1503 = vmatpush1.xpose.msra.mxu0 0.0
        %1504 = vmatprep.subr.mxu0 0.0
        %1505 = vmatpush1.xpose.msra.mxu0 0.0
        %1506 = vmatprep.subr.mxu0 0.0
        %1507 = vmatpush1.xpose.msra.mxu0 0.0
        %1508 = vmatprep.subr.mxu0 0.0
        %1509 = vmatpush1.xpose.msra.mxu0 0.0
        %1510 = vmatprep.subr.mxu0 0.0
        %1511 = vmatpush1.xpose.msra.mxu0 0.0
        %1512 = vmatprep.subr.mxu0 0.0
        %1513 = vmatpush1.xpose.msra.mxu0 0.0
        %1514 = vmatprep.subr.mxu0 0.0
        %1515 = vmatpush1.xpose.msra.mxu0 0.0
        %1516 = vmatprep.subr.mxu0 0.0
        %1517 = vmatpush1.xpose.msra.mxu0 0.0
        %1518 = vmatprep.subr.mxu0 0.0
        %1519 = vmatpush1.xpose.msra.mxu0 0.0
        %1520 = vmatprep.subr.mxu0 0.0
        %1521 = vmatpush1.xpose.msra.mxu0 0.0
        %1522 = vmatprep.subr.mxu0 0.0
        %1523 = vmatpush1.xpose.msra.mxu0 0.0
        %1524 = vmatprep.subr.mxu0 0.0
        %1525 = vmatpush1.xpose.msra.mxu0 0.0
        %1526 = vmatprep.subr.mxu0 0.0
        %1527 = vmatpush1.xpose.msra.mxu0 0.0
        %1528 = vmatprep.subr.mxu0 0.0
        %1529 = vmatpush1.xpose.msra.mxu0 0.0
        %1530 = vmatprep.subr.mxu0 0.0
        %1531 = vmatpush1.xpose.msra.mxu0 0.0
        %1532 = vmatprep.subr.mxu0 0.0
        %1533 = vmatpush1.xpose.msra.mxu0 0.0
        %1534 = vmatprep.subr.mxu0 0.0
        %1535 = vmatpush1.xpose.msra.mxu0 0.0
        %1536 = vmatprep.subr.mxu0 0.0
        %1537 = vmatpush1.xpose.msra.mxu0 0.0
        %1538 = vmatprep.subr.mxu0 0.0
        %1539 = vmatpush1.xpose.msra.mxu0 0.0
        %1540 = vmatprep.mubr.f32.mxu0 0.0
        %1541 = vmatmul.mubr.f32.gmra.mrb[0].mxu0 %v1468
        %v1542 = vpop.f32.mrb[0].mxu0
        %v1543 = vadd.f32 0.0, %v1542
        %v1544 = vpop.f32.mrb[0].mxu0
        %1545 = vmatprep.mubr.f32.mxu0 0.0
        %1546 = vmatmul.mubr.f32.gmra.mrb[0].mxu0 %v1470
        %v1547 = vpop.f32.mrb[0].mxu0
        %v1548 = vadd.f32 0.0, %v1547
        %v1549 = vpop.f32.mrb[0].mxu0
        %1550 = vdwg.mxu0
        %v1551 = vmul.f32 %v1543, 0.35355338
        %v1552 = vmul.f32 %v1548, 0.35355338
        %v1553 = vsel %vm535, -65504.0, %v1551
        %v1554 = vsel %vm535, -65504.0, %v1552
        %v1555 = vsel %vm538, %v1553, -inf
        %1556 = vmax.xlane.f32.xlu0 %v1555
        %v1557 = vpop.xlane.xlu0 %1556
        %v1558 = vsel %vm538, %v1554, -inf
        %1559 = vmax.xlane.f32.xlu0 %v1558
        %v1560 = vpop.xlane.xlu0 %1559
        %v1561 = vsub.f32 %v1553, %v1557
        %v1562 = vsub.f32 %v1554, %v1560
        %v1563 = vmul.f32 %v1561, 1.442695
        %v1564 = vpow.pop %v1563
        %v1565 = vmul.f32 %v1562, 1.442695
        %v1566 = vpow.pop %v1565
        %v1567 = vsel %vm538, %v1564, 0.0
        %1568 = vadd.xlane.f32.xlu0 %v1567
        %v1569 = vpop.xlane.xlu0 %1568
        %v1570 = vsel %vm538, %v1566, 0.0
        %1571 = vadd.xlane.f32.xlu0 %v1570
        %v1572 = vpop.xlane.xlu0 %1571
        %v1573 = vrcp.pop %v1569
        %v1574 = vrcp.pop %v1572
        %v1575 = vmul.f32 %v1564, %v1573
        %v1576 = vmul.f32 %v1566, %v1574
        %1577 = vrot.lane.b32.xlu0 %v419, 88
        %v1578 = vpop.permute.xlu0 %1577
        %1579 = vrot.lane.b32.xlu0 %v425, 88
        %v1580 = vpop.permute.xlu0 %1579
        %v1584 = vsel %vm538, %v1575, 0
        %v1587 = vsel %vm538, %v1576, 0
        %1589 = vmatprep.subr.mxu0 0.0
        %1590 = vmatpush1.msra.mxu0 %v1578
        %1591 = vmatprep.subr.mxu0 0.0
        %1592 = vmatpush1.msra.mxu0 %v1580
        %1593 = vmatprep.subr.mxu0 0.0
        %1594 = vmatpush1.msra.mxu0 0.0
        %1595 = vmatprep.subr.mxu0 0.0
        %1596 = vmatpush1.msra.mxu0 0.0
        %1597 = vmatprep.subr.mxu0 0.0
        %1598 = vmatpush1.msra.mxu0 0.0
        %1599 = vmatprep.subr.mxu0 0.0
        %1600 = vmatpush1.msra.mxu0 0.0
        %1601 = vmatprep.subr.mxu0 0.0
        %1602 = vmatpush1.msra.mxu0 0.0
        %1603 = vmatprep.subr.mxu0 0.0
        %1604 = vmatpush1.msra.mxu0 0.0
        %1605 = vmatprep.subr.mxu0 0.0
        %1606 = vmatpush1.msra.mxu0 0.0
        %1607 = vmatprep.subr.mxu0 0.0
        %1608 = vmatpush1.msra.mxu0 0.0
        %1609 = vmatprep.subr.mxu0 0.0
        %1610 = vmatpush1.msra.mxu0 0.0
        %1611 = vmatprep.subr.mxu0 0.0
        %1612 = vmatpush1.msra.mxu0 0.0
        %1613 = vmatprep.subr.mxu0 0.0
        %1614 = vmatpush1.msra.mxu0 0.0
        %1615 = vmatprep.subr.mxu0 0.0
        %1616 = vmatpush1.msra.mxu0 0.0
        %1617 = vmatprep.subr.mxu0 0.0
        %1618 = vmatpush1.msra.mxu0 0.0
        %1619 = vmatprep.subr.mxu0 0.0
        %1620 = vmatpush1.msra.mxu0 0.0
        %1621 = vmatprep.subr.mxu0 0.0
        %1622 = vmatpush1.msra.mxu0 0.0
        %1623 = vmatprep.subr.mxu0 0.0
        %1624 = vmatpush1.msra.mxu0 0.0
        %1625 = vmatprep.subr.mxu0 0.0
        %1626 = vmatpush1.msra.mxu0 0.0
        %1627 = vmatprep.subr.mxu0 0.0
        %1628 = vmatpush1.msra.mxu0 0.0
        %1629 = vmatprep.subr.mxu0 0.0
        %1630 = vmatpush1.msra.mxu0 0.0
        %1631 = vmatprep.subr.mxu0 0.0
        %1632 = vmatpush1.msra.mxu0 0.0
        %1633 = vmatprep.subr.mxu0 0.0
        %1634 = vmatpush1.msra.mxu0 0.0
        %1635 = vmatprep.subr.mxu0 0.0
        %1636 = vmatpush1.msra.mxu0 0.0
        %1637 = vmatprep.subr.mxu0 0.0
        %1638 = vmatpush1.msra.mxu0 0.0
        %1639 = vmatprep.subr.mxu0 0.0
        %1640 = vmatpush1.msra.mxu0 0.0
        %1641 = vmatprep.subr.mxu0 0.0
        %1642 = vmatpush1.msra.mxu0 0.0
        %1643 = vmatprep.subr.mxu0 0.0
        %1644 = vmatpush1.msra.mxu0 0.0
        %1645 = vmatprep.subr.mxu0 0.0
        %1646 = vmatpush1.msra.mxu0 0.0
        %1647 = vmatprep.subr.mxu0 0.0
        %1648 = vmatpush1.msra.mxu0 0.0
        %1649 = vmatprep.subr.mxu0 0.0
        %1650 = vmatpush1.msra.mxu0 0.0
        %1651 = vmatprep.subr.mxu0 0.0
        %1652 = vmatpush1.msra.mxu0 0.0
        %1653 = vmatprep.mubr.f32.mxu0 0.0
        %1654 = vmatmul.mubr.f32.gmra.mrb[0].mxu0 %v1584
        %v1655 = vpop.f32.mrb[0].mxu0
        %v1656 = vadd.f32 0.0, %v1655
        %v1657 = vpop.f32.mrb[0].mxu0
        %1658 = vmatprep.mubr.f32.mxu0 0.0
        %1659 = vmatmul.mubr.f32.gmra.mrb[0].mxu0 %v1587
        %v1660 = vpop.f32.mrb[0].mxu0
        %v1661 = vadd.f32 0.0, %v1660
        %v1662 = vpop.f32.mrb[0].mxu0
        %1663 = vdwg.mxu0
        %1664 = vrot.lane.b32.xlu0 %v417, 80
        %v1665 = vpop.permute.xlu0 %1664
        %1666 = vrot.lane.b32.xlu0 %v423, 80
        %v1667 = vpop.permute.xlu0 %1666
        %1668 = vrot.lane.b32.xlu0 %v417, 16
        %v1669 = vpop.permute.xlu0 %1668
        %1670 = vrot.lane.b32.xlu0 %v423, 16
        %v1671 = vpop.permute.xlu0 %1670
        %v1672 = vsel %vm443, %v1665, 0
        %v1674 = vsel %vm443, %v1667, 0
        %v1676 = vsel %vm443, %v1669, 0
        %v1678 = vsel %vm443, %v1671, 0
        %1680 = vmatprep.subr.mxu0 0.0
        %1681 = vmatpush1.xpose.msra.mxu0 %v1676
        %1682 = vmatprep.subr.mxu0 0.0
        %1683 = vmatpush1.xpose.msra.mxu0 %v1678
        %1684 = vmatprep.subr.mxu0 0.0
        %1685 = vmatpush1.xpose.msra.mxu0 0.0
        %1686 = vmatprep.subr.mxu0 0.0
        %1687 = vmatpush1.xpose.msra.mxu0 0.0
        %1688 = vmatprep.subr.mxu0 0.0
        %1689 = vmatpush1.xpose.msra.mxu0 0.0
        %1690 = vmatprep.subr.mxu0 0.0
        %1691 = vmatpush1.xpose.msra.mxu0 0.0
        %1692 = vmatprep.subr.mxu0 0.0
        %1693 = vmatpush1.xpose.msra.mxu0 0.0
        %1694 = vmatprep.subr.mxu0 0.0
        %1695 = vmatpush1.xpose.msra.mxu0 0.0
        %1696 = vmatprep.subr.mxu0 0.0
        %1697 = vmatpush1.xpose.msra.mxu0 0.0
        %1698 = vmatprep.subr.mxu0 0.0
        %1699 = vmatpush1.xpose.msra.mxu0 0.0
        %1700 = vmatprep.subr.mxu0 0.0
        %1701 = vmatpush1.xpose.msra.mxu0 0.0
        %1702 = vmatprep.subr.mxu0 0.0
        %1703 = vmatpush1.xpose.msra.mxu0 0.0
        %1704 = vmatprep.subr.mxu0 0.0
        %1705 = vmatpush1.xpose.msra.mxu0 0.0
        %1706 = vmatprep.subr.mxu0 0.0
        %1707 = vmatpush1.xpose.msra.mxu0 0.0
        %1708 = vmatprep.subr.mxu0 0.0
        %1709 = vmatpush1.xpose.msra.mxu0 0.0
        %1710 = vmatprep.subr.mxu0 0.0
        %1711 = vmatpush1.xpose.msra.mxu0 0.0
        %1712 = vmatprep.subr.mxu0 0.0
        %1713 = vmatpush1.xpose.msra.mxu0 0.0
        %1714 = vmatprep.subr.mxu0 0.0
        %1715 = vmatpush1.xpose.msra.mxu0 0.0
        %1716 = vmatprep.subr.mxu0 0.0
        %1717 = vmatpush1.xpose.msra.mxu0 0.0
        %1718 = vmatprep.subr.mxu0 0.0
        %1719 = vmatpush1.xpose.msra.mxu0 0.0
        %1720 = vmatprep.subr.mxu0 0.0
        %1721 = vmatpush1.xpose.msra.mxu0 0.0
        %1722 = vmatprep.subr.mxu0 0.0
        %1723 = vmatpush1.xpose.msra.mxu0 0.0
        %1724 = vmatprep.subr.mxu0 0.0
        %1725 = vmatpush1.xpose.msra.mxu0 0.0
        %1726 = vmatprep.subr.mxu0 0.0
        %1727 = vmatpush1.xpose.msra.mxu0 0.0
        %1728 = vmatprep.subr.mxu0 0.0
        %1729 = vmatpush1.xpose.msra.mxu0 0.0
        %1730 = vmatprep.subr.mxu0 0.0
        %1731 = vmatpush1.xpose.msra.mxu0 0.0
        %1732 = vmatprep.subr.mxu0 0.0
        %1733 = vmatpush1.xpose.msra.mxu0 0.0
        %1734 = vmatprep.subr.mxu0 0.0
        %1735 = vmatpush1.xpose.msra.mxu0 0.0
        %1736 = vmatprep.subr.mxu0 0.0
        %1737 = vmatpush1.xpose.msra.mxu0 0.0
        %1738 = vmatprep.subr.mxu0 0.0
        %1739 = vmatpush1.xpose.msra.mxu0 0.0
        %1740 = vmatprep.subr.mxu0 0.0
        %1741 = vmatpush1.xpose.msra.mxu0 0.0
        %1742 = vmatprep.subr.mxu0 0.0
        %1743 = vmatpush1.xpose.msra.mxu0 0.0
        %1744 = vmatprep.mubr.f32.mxu0 0.0
        %1745 = vmatmul.mubr.f32.gmra.mrb[0].mxu0 %v1672
        %v1746 = vpop.f32.mrb[0].mxu0
        %v1747 = vadd.f32 0.0, %v1746
        %v1748 = vpop.f32.mrb[0].mxu0
        %1749 = vmatprep.mubr.f32.mxu0 0.0
        %1750 = vmatmul.mubr.f32.gmra.mrb[0].mxu0 %v1674
        %v1751 = vpop.f32.mrb[0].mxu0
        %v1752 = vadd.f32 0.0, %v1751
        %v1753 = vpop.f32.mrb[0].mxu0
        %1754 = vdwg.mxu0
        %v1755 = vmul.f32 %v1747, 0.35355338
        %v1756 = vmul.f32 %v1752, 0.35355338
        %v1757 = vsel %vm535, -65504.0, %v1755
        %v1758 = vsel %vm535, -65504.0, %v1756
        %v1759 = vsel %vm538, %v1757, -inf
        %1760 = vmax.xlane.f32.xlu0 %v1759
        %v1761 = vpop.xlane.xlu0 %1760
        %v1762 = vsel %vm538, %v1758, -inf
        %1763 = vmax.xlane.f32.xlu0 %v1762
        %v1764 = vpop.xlane.xlu0 %1763
        %v1765 = vsub.f32 %v1757, %v1761
        %v1766 = vsub.f32 %v1758, %v1764
        %v1767 = vmul.f32 %v1765, 1.442695
        %v1768 = vpow.pop %v1767
        %v1769 = vmul.f32 %v1766, 1.442695
        %v1770 = vpow.pop %v1769
        %v1771 = vsel %vm538, %v1768, 0.0
        %1772 = vadd.xlane.f32.xlu0 %v1771
        %v1773 = vpop.xlane.xlu0 %1772
        %v1774 = vsel %vm538, %v1770, 0.0
        %1775 = vadd.xlane.f32.xlu0 %v1774
        %v1776 = vpop.xlane.xlu0 %1775
        %v1777 = vrcp.pop %v1773
        %v1778 = vrcp.pop %v1776
        %v1779 = vmul.f32 %v1768, %v1777
        %v1780 = vmul.f32 %v1770, %v1778
        %1781 = vrot.lane.b32.xlu0 %v419, 80
        %v1782 = vpop.permute.xlu0 %1781
        %1783 = vrot.lane.b32.xlu0 %v425, 80
        %v1784 = vpop.permute.xlu0 %1783
        %v1788 = vsel %vm538, %v1779, 0
        %v1791 = vsel %vm538, %v1780, 0
        %1793 = vmatprep.subr.mxu0 0.0
        %1794 = vmatpush1.msra.mxu0 %v1782
        %1795 = vmatprep.subr.mxu0 0.0
        %1796 = vmatpush1.msra.mxu0 %v1784
        %1797 = vmatprep.subr.mxu0 0.0
        %1798 = vmatpush1.msra.mxu0 0.0
        %1799 = vmatprep.subr.mxu0 0.0
        %1800 = vmatpush1.msra.mxu0 0.0
        %1801 = vmatprep.subr.mxu0 0.0
        %1802 = vmatpush1.msra.mxu0 0.0
        %1803 = vmatprep.subr.mxu0 0.0
        %1804 = vmatpush1.msra.mxu0 0.0
        %1805 = vmatprep.subr.mxu0 0.0
        %1806 = vmatpush1.msra.mxu0 0.0
        %1807 = vmatprep.subr.mxu0 0.0
        %1808 = vmatpush1.msra.mxu0 0.0
        %1809 = vmatprep.subr.mxu0 0.0
        %1810 = vmatpush1.msra.mxu0 0.0
        %1811 = vmatprep.subr.mxu0 0.0
        %1812 = vmatpush1.msra.mxu0 0.0
        %1813 = vmatprep.subr.mxu0 0.0
        %1814 = vmatpush1.msra.mxu0 0.0
        %1815 = vmatprep.subr.mxu0 0.0
        %1816 = vmatpush1.msra.mxu0 0.0
        %1817 = vmatprep.subr.mxu0 0.0
        %1818 = vmatpush1.msra.mxu0 0.0
        %1819 = vmatprep.subr.mxu0 0.0
        %1820 = vmatpush1.msra.mxu0 0.0
        %1821 = vmatprep.subr.mxu0 0.0
        %1822 = vmatpush1.msra.mxu0 0.0
        %1823 = vmatprep.subr.mxu0 0.0
        %1824 = vmatpush1.msra.mxu0 0.0
        %1825 = vmatprep.subr.mxu0 0.0
        %1826 = vmatpush1.msra.mxu0 0.0
        %1827 = vmatprep.subr.mxu0 0.0
        %1828 = vmatpush1.msra.mxu0 0.0
        %1829 = vmatprep.subr.mxu0 0.0
        %1830 = vmatpush1.msra.mxu0 0.0
        %1831 = vmatprep.subr.mxu0 0.0
        %1832 = vmatpush1.msra.mxu0 0.0
        %1833 = vmatprep.subr.mxu0 0.0
        %1834 = vmatpush1.msra.mxu0 0.0
        %1835 = vmatprep.subr.mxu0 0.0
        %1836 = vmatpush1.msra.mxu0 0.0
        %1837 = vmatprep.subr.mxu0 0.0
        %1838 = vmatpush1.msra.mxu0 0.0
        %1839 = vmatprep.subr.mxu0 0.0
        %1840 = vmatpush1.msra.mxu0 0.0
        %1841 = vmatprep.subr.mxu0 0.0
        %1842 = vmatpush1.msra.mxu0 0.0
        %1843 = vmatprep.subr.mxu0 0.0
        %1844 = vmatpush1.msra.mxu0 0.0
        %1845 = vmatprep.subr.mxu0 0.0
        %1846 = vmatpush1.msra.mxu0 0.0
        %1847 = vmatprep.subr.mxu0 0.0
        %1848 = vmatpush1.msra.mxu0 0.0
        %1849 = vmatprep.subr.mxu0 0.0
        %1850 = vmatpush1.msra.mxu0 0.0
        %1851 = vmatprep.subr.mxu0 0.0
        %1852 = vmatpush1.msra.mxu0 0.0
        %1853 = vmatprep.subr.mxu0 0.0
        %1854 = vmatpush1.msra.mxu0 0.0
        %1855 = vmatprep.subr.mxu0 0.0
        %1856 = vmatpush1.msra.mxu0 0.0
        %1857 = vmatprep.mubr.f32.mxu0 0.0
        %1858 = vmatmul.mubr.f32.gmra.mrb[0].mxu0 %v1788
        %v1859 = vpop.f32.mrb[0].mxu0
        %v1860 = vadd.f32 0.0, %v1859
        %v1861 = vpop.f32.mrb[0].mxu0
        %1862 = vmatprep.mubr.f32.mxu0 0.0
        %1863 = vmatmul.mubr.f32.gmra.mrb[0].mxu0 %v1791
        %v1864 = vpop.f32.mrb[0].mxu0
        %v1865 = vadd.f32 0.0, %v1864
        %v1866 = vpop.f32.mrb[0].mxu0
        %1867 = vdwg.mxu0
        %1868 = vrot.lane.b32.xlu0 %v417, 72
        %v1869 = vpop.permute.xlu0 %1868
        %1870 = vrot.lane.b32.xlu0 %v423, 72
        %v1871 = vpop.permute.xlu0 %1870
        %1872 = vrot.lane.b32.xlu0 %v417, 8
        %v1873 = vpop.permute.xlu0 %1872
        %1874 = vrot.lane.b32.xlu0 %v423, 8
        %v1875 = vpop.permute.xlu0 %1874
        %v1876 = vsel %vm443, %v1869, 0
        %v1878 = vsel %vm443, %v1871, 0
        %v1880 = vsel %vm443, %v1873, 0
        %v1882 = vsel %vm443, %v1875, 0
        %1884 = vmatprep.subr.mxu0 0.0
        %1885 = vmatpush1.xpose.msra.mxu0 %v1880
        %1886 = vmatprep.subr.mxu0 0.0
        %1887 = vmatpush1.xpose.msra.mxu0 %v1882
        %1888 = vmatprep.subr.mxu0 0.0
        %1889 = vmatpush1.xpose.msra.mxu0 0.0
        %1890 = vmatprep.subr.mxu0 0.0
        %1891 = vmatpush1.xpose.msra.mxu0 0.0
        %1892 = vmatprep.subr.mxu0 0.0
        %1893 = vmatpush1.xpose.msra.mxu0 0.0
        %1894 = vmatprep.subr.mxu0 0.0
        %1895 = vmatpush1.xpose.msra.mxu0 0.0
        %1896 = vmatprep.subr.mxu0 0.0
        %1897 = vmatpush1.xpose.msra.mxu0 0.0
        %1898 = vmatprep.subr.mxu0 0.0
        %1899 = vmatpush1.xpose.msra.mxu0 0.0
        %1900 = vmatprep.subr.mxu0 0.0
        %1901 = vmatpush1.xpose.msra.mxu0 0.0
        %1902 = vmatprep.subr.mxu0 0.0
        %1903 = vmatpush1.xpose.msra.mxu0 0.0
        %1904 = vmatprep.subr.mxu0 0.0
        %1905 = vmatpush1.xpose.msra.mxu0 0.0
        %1906 = vmatprep.subr.mxu0 0.0
        %1907 = vmatpush1.xpose.msra.mxu0 0.0
        %1908 = vmatprep.subr.mxu0 0.0
        %1909 = vmatpush1.xpose.msra.mxu0 0.0
        %1910 = vmatprep.subr.mxu0 0.0
        %1911 = vmatpush1.xpose.msra.mxu0 0.0
        %1912 = vmatprep.subr.mxu0 0.0
        %1913 = vmatpush1.xpose.msra.mxu0 0.0
        %1914 = vmatprep.subr.mxu0 0.0
        %1915 = vmatpush1.xpose.msra.mxu0 0.0
        %1916 = vmatprep.subr.mxu0 0.0
        %1917 = vmatpush1.xpose.msra.mxu0 0.0
        %1918 = vmatprep.subr.mxu0 0.0
        %1919 = vmatpush1.xpose.msra.mxu0 0.0
        %1920 = vmatprep.subr.mxu0 0.0
        %1921 = vmatpush1.xpose.msra.mxu0 0.0
        %1922 = vmatprep.subr.mxu0 0.0
        %1923 = vmatpush1.xpose.msra.mxu0 0.0
        %1924 = vmatprep.subr.mxu0 0.0
        %1925 = vmatpush1.xpose.msra.mxu0 0.0
        %1926 = vmatprep.subr.mxu0 0.0
        %1927 = vmatpush1.xpose.msra.mxu0 0.0
        %1928 = vmatprep.subr.mxu0 0.0
        %1929 = vmatpush1.xpose.msra.mxu0 0.0
        %1930 = vmatprep.subr.mxu0 0.0
        %1931 = vmatpush1.xpose.msra.mxu0 0.0
        %1932 = vmatprep.subr.mxu0 0.0
        %1933 = vmatpush1.xpose.msra.mxu0 0.0
        %1934 = vmatprep.subr.mxu0 0.0
        %1935 = vmatpush1.xpose.msra.mxu0 0.0
        %1936 = vmatprep.subr.mxu0 0.0
        %1937 = vmatpush1.xpose.msra.mxu0 0.0
        %1938 = vmatprep.subr.mxu0 0.0
        %1939 = vmatpush1.xpose.msra.mxu0 0.0
        %1940 = vmatprep.subr.mxu0 0.0
        %1941 = vmatpush1.xpose.msra.mxu0 0.0
        %1942 = vmatprep.subr.mxu0 0.0
        %1943 = vmatpush1.xpose.msra.mxu0 0.0
        %1944 = vmatprep.subr.mxu0 0.0
        %1945 = vmatpush1.xpose.msra.mxu0 0.0
        %1946 = vmatprep.subr.mxu0 0.0
        %1947 = vmatpush1.xpose.msra.mxu0 0.0
        %1948 = vmatprep.mubr.f32.mxu0 0.0
        %1949 = vmatmul.mubr.f32.gmra.mrb[0].mxu0 %v1876
        %v1950 = vpop.f32.mrb[0].mxu0
        %v1951 = vadd.f32 0.0, %v1950
        %v1952 = vpop.f32.mrb[0].mxu0
        %1953 = vmatprep.mubr.f32.mxu0 0.0
        %1954 = vmatmul.mubr.f32.gmra.mrb[0].mxu0 %v1878
        %v1955 = vpop.f32.mrb[0].mxu0
        %v1956 = vadd.f32 0.0, %v1955
        %v1957 = vpop.f32.mrb[0].mxu0
        %1958 = vdwg.mxu0
        %v1959 = vmul.f32 %v1951, 0.35355338
        %v1960 = vmul.f32 %v1956, 0.35355338
        %v1961 = vsel %vm535, -65504.0, %v1959
        %v1962 = vsel %vm535, -65504.0, %v1960
        %v1963 = vsel %vm538, %v1961, -inf
        %1964 = vmax.xlane.f32.xlu0 %v1963
        %v1965 = vpop.xlane.xlu0 %1964
        %v1966 = vsel %vm538, %v1962, -inf
        %1967 = vmax.xlane.f32.xlu0 %v1966
        %v1968 = vpop.xlane.xlu0 %1967
        %v1969 = vsub.f32 %v1961, %v1965
        %v1970 = vsub.f32 %v1962, %v1968
        %v1971 = vmul.f32 %v1969, 1.442695
        %v1972 = vpow.pop %v1971
        %v1973 = vmul.f32 %v1970, 1.442695
        %v1974 = vpow.pop %v1973
        %v1975 = vsel %vm538, %v1972, 0.0
        %1976 = vadd.xlane.f32.xlu0 %v1975
        %v1977 = vpop.xlane.xlu0 %1976
        %v1978 = vsel %vm538, %v1974, 0.0
        %1979 = vadd.xlane.f32.xlu0 %v1978
        %v1980 = vpop.xlane.xlu0 %1979
        %v1981 = vrcp.pop %v1977
        %v1982 = vrcp.pop %v1980
        %v1983 = vmul.f32 %v1972, %v1981
        %v1984 = vmul.f32 %v1974, %v1982
        %1985 = vrot.lane.b32.xlu0 %v419, 72
        %v1986 = vpop.permute.xlu0 %1985
        %1987 = vrot.lane.b32.xlu0 %v425, 72
        %v1988 = vpop.permute.xlu0 %1987
        %v1992 = vsel %vm538, %v1983, 0
        %v1995 = vsel %vm538, %v1984, 0
        %1997 = vmatprep.subr.mxu0 0.0
        %1998 = vmatpush1.msra.mxu0 %v1986
        %1999 = vmatprep.subr.mxu0 0.0
        %2000 = vmatpush1.msra.mxu0 %v1988
        %2001 = vmatprep.subr.mxu0 0.0
        %2002 = vmatpush1.msra.mxu0 0.0
        %2003 = vmatprep.subr.mxu0 0.0
        %2004 = vmatpush1.msra.mxu0 0.0
        %2005 = vmatprep.subr.mxu0 0.0
        %2006 = vmatpush1.msra.mxu0 0.0
        %2007 = vmatprep.subr.mxu0 0.0
        %2008 = vmatpush1.msra.mxu0 0.0
        %2009 = vmatprep.subr.mxu0 0.0
        %2010 = vmatpush1.msra.mxu0 0.0
        %2011 = vmatprep.subr.mxu0 0.0
        %2012 = vmatpush1.msra.mxu0 0.0
        %2013 = vmatprep.subr.mxu0 0.0
        %2014 = vmatpush1.msra.mxu0 0.0
        %2015 = vmatprep.subr.mxu0 0.0
        %2016 = vmatpush1.msra.mxu0 0.0
        %2017 = vmatprep.subr.mxu0 0.0
        %2018 = vmatpush1.msra.mxu0 0.0
        %2019 = vmatprep.subr.mxu0 0.0
        %2020 = vmatpush1.msra.mxu0 0.0
        %2021 = vmatprep.subr.mxu0 0.0
        %2022 = vmatpush1.msra.mxu0 0.0
        %2023 = vmatprep.subr.mxu0 0.0
        %2024 = vmatpush1.msra.mxu0 0.0
        %2025 = vmatprep.subr.mxu0 0.0
        %2026 = vmatpush1.msra.mxu0 0.0
        %2027 = vmatprep.subr.mxu0 0.0
        %2028 = vmatpush1.msra.mxu0 0.0
        %2029 = vmatprep.subr.mxu0 0.0
        %2030 = vmatpush1.msra.mxu0 0.0
        %2031 = vmatprep.subr.mxu0 0.0
        %2032 = vmatpush1.msra.mxu0 0.0
        %2033 = vmatprep.subr.mxu0 0.0
        %2034 = vmatpush1.msra.mxu0 0.0
        %2035 = vmatprep.subr.mxu0 0.0
        %2036 = vmatpush1.msra.mxu0 0.0
        %2037 = vmatprep.subr.mxu0 0.0
        %2038 = vmatpush1.msra.mxu0 0.0
        %2039 = vmatprep.subr.mxu0 0.0
        %2040 = vmatpush1.msra.mxu0 0.0
        %2041 = vmatprep.subr.mxu0 0.0
        %2042 = vmatpush1.msra.mxu0 0.0
        %2043 = vmatprep.subr.mxu0 0.0
        %2044 = vmatpush1.msra.mxu0 0.0
        %2045 = vmatprep.subr.mxu0 0.0
        %2046 = vmatpush1.msra.mxu0 0.0
        %2047 = vmatprep.subr.mxu0 0.0
        %2048 = vmatpush1.msra.mxu0 0.0
        %2049 = vmatprep.subr.mxu0 0.0
        %2050 = vmatpush1.msra.mxu0 0.0
        %2051 = vmatprep.subr.mxu0 0.0
        %2052 = vmatpush1.msra.mxu0 0.0
        %2053 = vmatprep.subr.mxu0 0.0
        %2054 = vmatpush1.msra.mxu0 0.0
        %2055 = vmatprep.subr.mxu0 0.0
        %2056 = vmatpush1.msra.mxu0 0.0
        %2057 = vmatprep.subr.mxu0 0.0
        %2058 = vmatpush1.msra.mxu0 0.0
        %2059 = vmatprep.subr.mxu0 0.0
        %2060 = vmatpush1.msra.mxu0 0.0
        %2061 = vmatprep.mubr.f32.mxu0 0.0
        %2062 = vmatmul.mubr.f32.gmra.mrb[0].mxu0 %v1992
        %v2063 = vpop.f32.mrb[0].mxu0
        %v2064 = vadd.f32 0.0, %v2063
        %v2065 = vpop.f32.mrb[0].mxu0
        %2066 = vmatprep.mubr.f32.mxu0 0.0
        %2067 = vmatmul.mubr.f32.gmra.mrb[0].mxu0 %v1995
        %v2068 = vpop.f32.mrb[0].mxu0
        %v2069 = vadd.f32 0.0, %v2068
        %v2070 = vpop.f32.mrb[0].mxu0
        %2071 = vdwg.mxu0
        %2074 = vrot.lane.b32.xlu0 %v840, 8
        %v2075 = vpop.permute.xlu0 %2074
        %2076 = vrot.lane.b32.xlu0 %v845, 8
        %v2077 = vpop.permute.xlu0 %2076
        %2082 = vrot.lane.b32.xlu0 %v1044, 16
        %v2083 = vpop.permute.xlu0 %2082
        %2084 = vrot.lane.b32.xlu0 %v1049, 16
        %v2085 = vpop.permute.xlu0 %2084
        %2090 = vrot.lane.b32.xlu0 %v1248, 24
        %v2091 = vpop.permute.xlu0 %2090
        %2092 = vrot.lane.b32.xlu0 %v1253, 24
        %v2093 = vpop.permute.xlu0 %2092
        %2098 = vrot.lane.b32.xlu0 %v1452, 32
        %v2099 = vpop.permute.xlu0 %2098
        %2100 = vrot.lane.b32.xlu0 %v1457, 32
        %v2101 = vpop.permute.xlu0 %2100
        %2106 = vrot.lane.b32.xlu0 %v1656, 40
        %v2107 = vpop.permute.xlu0 %2106
        %2108 = vrot.lane.b32.xlu0 %v1661, 40
        %v2109 = vpop.permute.xlu0 %2108
        %2114 = vrot.lane.b32.xlu0 %v1860, 48
        %v2115 = vpop.permute.xlu0 %2114
        %2116 = vrot.lane.b32.xlu0 %v1865, 48
        %v2117 = vpop.permute.xlu0 %2116
        %2122 = vrot.lane.b32.xlu0 %v2064, 56
        %v2123 = vpop.permute.xlu0 %2122
        %2124 = vrot.lane.b32.xlu0 %v2069, 56
        %v2125 = vpop.permute.xlu0 %2124
        %v2128 = vsel %vm443, %v634, %v2075
        %v2129 = vsel %vm443, %v639, %v2077
        %v2130 = vsel %vm538, %v2128, %v2083
        %v2131 = vsel %vm538, %v2129, %v2085
        %vm2132 = vcmask 195584
        %v2133 = vsel %vm2132, %v2130, %v2091
        %v2134 = vsel %vm2132, %v2131, %v2093
        %vm2135 = vcmask 261120
        %v2136 = vsel %vm2135, %v2133, %v2099
        %v2137 = vsel %vm2135, %v2134, %v2101
        %vm2138 = vcmask 326656
        %v2139 = vsel %vm2138, %v2136, %v2107
        %v2140 = vsel %vm2138, %v2137, %v2109
        %vm2141 = vcmask 392192
        %v2142 = vsel %vm2141, %v2139, %v2115
        %v2143 = vsel %vm2141, %v2140, %v2117
        %vm2144 = vcmask 457728
        %v2145 = vsel %vm2144, %v2142, %v2123
        %v2146 = vsel %vm2144, %v2143, %v2125
        %v2148 = vlaneseq
        %v2149 = vshrl.u32 %v2148, 7
        %v2150 = vsub.s32 0, %v2149
        %v2151 = vrot.slane %v436, %v2150
        %v2154 = vsel %vm343, %v2145, 0
        %v2157 = vsel %vm343, %v2146, 0
        %2159 = vmatprep.subr.mxu0 0.0
        %2160 = vmatpush1.msra.mxu0 %v428
        %2161 = vmatprep.subr.mxu0 0.0
        %2162 = vmatpush1.msra.mxu0 %v429
        %2163 = vmatprep.subr.mxu0 0.0
        %2164 = vmatpush1.msra.mxu0 %v430
        %2165 = vmatprep.subr.mxu0 0.0
        %2166 = vmatpush1.msra.mxu0 %v431
        %2167 = vmatprep.subr.mxu0 0.0
        %2168 = vmatpush1.msra.mxu0 %v432
        %2169 = vmatprep.subr.mxu0 0.0
        %2170 = vmatpush1.msra.mxu0 %v433
        %2171 = vmatprep.subr.mxu0 0.0
        %2172 = vmatpush1.msra.mxu0 %v434
        %2173 = vmatprep.subr.mxu0 0.0
        %2174 = vmatpush1.msra.mxu0 %v435
        %2175 = vmatprep.subr.mxu0 0.0
        %2176 = vmatpush1.msra.mxu0 0.0
        %2177 = vmatprep.subr.mxu0 0.0
        %2178 = vmatpush1.msra.mxu0 0.0
        %2179 = vmatprep.subr.mxu0 0.0
        %2180 = vmatpush1.msra.mxu0 0.0
        %2181 = vmatprep.subr.mxu0 0.0
        %2182 = vmatpush1.msra.mxu0 0.0
        %2183 = vmatprep.subr.mxu0 0.0
        %2184 = vmatpush1.msra.mxu0 0.0
        %2185 = vmatprep.subr.mxu0 0.0
        %2186 = vmatpush1.msra.mxu0 0.0
        %2187 = vmatprep.subr.mxu0 0.0
        %2188 = vmatpush1.msra.mxu0 0.0
        %2189 = vmatprep.subr.mxu0 0.0
        %2190 = vmatpush1.msra.mxu0 0.0
        %2191 = vmatprep.subr.mxu0 0.0
        %2192 = vmatpush1.msra.mxu0 0.0
        %2193 = vmatprep.subr.mxu0 0.0
        %2194 = vmatpush1.msra.mxu0 0.0
        %2195 = vmatprep.subr.mxu0 0.0
        %2196 = vmatpush1.msra.mxu0 0.0
        %2197 = vmatprep.subr.mxu0 0.0
        %2198 = vmatpush1.msra.mxu0 0.0
        %2199 = vmatprep.subr.mxu0 0.0
        %2200 = vmatpush1.msra.mxu0 0.0
        %2201 = vmatprep.subr.mxu0 0.0
        %2202 = vmatpush1.msra.mxu0 0.0
        %2203 = vmatprep.subr.mxu0 0.0
        %2204 = vmatpush1.msra.mxu0 0.0
        %2205 = vmatprep.subr.mxu0 0.0
        %2206 = vmatpush1.msra.mxu0 0.0
        %2207 = vmatprep.subr.mxu0 0.0
        %2208 = vmatpush1.msra.mxu0 0.0
        %2209 = vmatprep.subr.mxu0 0.0
        %2210 = vmatpush1.msra.mxu0 0.0
        %2211 = vmatprep.subr.mxu0 0.0
        %2212 = vmatpush1.msra.mxu0 0.0
        %2213 = vmatprep.subr.mxu0 0.0
        %2214 = vmatpush1.msra.mxu0 0.0
        %2215 = vmatprep.subr.mxu0 0.0
        %2216 = vmatpush1.msra.mxu0 0.0
        %2217 = vmatprep.subr.mxu0 0.0
        %2218 = vmatpush1.msra.mxu0 0.0
        %2219 = vmatprep.subr.mxu0 0.0
        %2220 = vmatpush1.msra.mxu0 0.0
        %2221 = vmatprep.subr.mxu0 0.0
        %2222 = vmatpush1.msra.mxu0 0.0
        %2223 = vmatprep.mubr.f32.mxu0 0.0
        %2224 = vmatmul.mubr.f32.gmra.mrb[0].mxu0 %v2154
        %v2225 = vpop.f32.mrb[0].mxu0
        %v2226 = vadd.f32 %v2151, %v2225
        %v2227 = vpop.f32.mrb[0].mxu0
        %2228 = vmatprep.mubr.f32.mxu0 0.0
        %2229 = vmatmul.mubr.f32.gmra.mrb[0].mxu0 %v2157
        %v2230 = vpop.f32.mrb[0].mxu0
        %v2231 = vadd.f32 %v2151, %v2230
        %v2232 = vpop.f32.mrb[0].mxu0
        %2233 = vdwg.mxu0
        %2234 = vst.msk [vmem:[%s309] sm:$0xff] %vm343, %v2226
        %2235 = vst.msk [vmem:[%s309 + $0x8] sm:$0xff] %vm343, %v2231
        %s2236 = sand.u32 %s168, 1
        %s2237 = scalar_lea.sflag [#allocation4], %s2236
        %s2238 = sand.u32 %s168, 1
        %s2239 = smul.addr %s2238, 16
        %s2240 = scalar_lea.vmem [#allocation8], %s2239
        // Predicated region
        $region57: #{tpu_custom_call.1} parent=43 // pred_check
          %p2241 = pneg %p178
        $region58: #{tpu_custom_call.1} parent=43 // pred_check_branch
          %2243 = sbr.rel (%p2241) target = $region60
        $region59: #{tpu_custom_call.1} parent=43 // pred_region
          %s2245 = ssub.s32 256, 256
          %2246 = vsyncadd %s2237, %s2245
          %s2247 = smul.addr %s24, 2
          %s2248 = smul.addr %s2247, 128
          %s2249 = scalar_lea.hbm %s6, %s2248
          %s2250 = sshll.u32 %s2240, 4
          %s2251 = int_to_ptr.vmem [resolvable:$true] %s2250
          %2256 = dma.vmem_to_hbm [thread:$0]  %s2251, 256, %s2249, %s2237, 128, 128, 8
        $region60: #{tpu_custom_call.1} parent=43 // pred_fallthru
          _
      $region44: #{tpu_custom_call.1} parent=5 // pred_fallthru
        _
      %p2257 = scmp.le.s32.totalorder 2, %s19
      // Predicated region
      $region61: #{tpu_custom_call.1} parent=5 // pred_check
        %p2258 = pneg %p2257
      $region62: #{tpu_custom_call.1} parent=5 // pred_check_branch
        %2260 = sbr.rel (%p2258) target = $region64
      $region63: #{tpu_custom_call.1} parent=5 // pred_region
        %s2261 = ssub.s32 %s19, 2
        // Predicated region
        $region65: #{tpu_custom_call.1} parent=63 // pred_check
          %p2262 = pneg %p184
        $region66: #{tpu_custom_call.1} parent=63 // pred_check_branch
          %2264 = sbr.rel (%p2262) target = $region68
        $region67: #{tpu_custom_call.1} parent=63 // pred_region
          %s2265 = sand.u32 %s169, 1
          %s2266 = scalar_lea.sflag [#allocation4], %s2265
          %s2267 = sand.u32 %s169, 1
          %s2268 = smul.addr %s2267, 16
          %s2269 = scalar_lea.vmem [#allocation8], %s2268
          %2270 = dma.done %s2266, 256
        $region68: #{tpu_custom_call.1} parent=63 // pred_fallthru
          _
      $region64: #{tpu_custom_call.1} parent=5 // pred_fallthru
        _
    $region6: #{tpu_custom_call.1} parent=1 // loop_footer
      %s23 = sadd.s32 1, %s19
    $region7: #{tpu_custom_call.1} parent=1 // loop_footer_branch
      %18 = sbr.rel target = $region3
    $region8: #{tpu_custom_call.1} parent=1 // loop_exit
      _
    %2271 = vsyncpa [#allocation3], 1
    %s2272 = scalar_lea.sflag [#allocation3], 1
    %2273 = vsyncpa %s2272, 1
    %2274 = vsyncpa [#allocation6], 1
    %2275 = vsyncpa [#allocation4], 1
    %s2276 = scalar_lea.sflag [#allocation4], 1
    %2277 = vsyncpa %s2276, 1

</llo_original>
